<compile_context>
chip_gen: v6e
topology: v6e:2x2x1
jax: 0.10.0
libtpu: 0.0.40
codegen_flags: <defaults>
</compile_context>

<pallas_src>
import functools

import jax
import jax.numpy as jnp
import numpy as np
from jax.experimental import pallas as pl
from jax.experimental.pallas import tpu as pltpu


def _round_up(x, m):
    return (x + m - 1) // m * m


def _tpu_config():
    """Returns (is_v5e, vmem_limit_bytes) — trace-time HW query with safe fallbacks."""
    kind = ""
    try:
        kind = jax.devices()[0].device_kind.lower()
    except Exception:
        pass
    is_v5e = ("v5 lite" in kind) or ("v5e" in kind) or ("v5litepod" in kind)
    vmem_cap = None
    try:
        vmem_cap = int(pltpu.get_tpu_info().vmem_capacity_bytes)
    except Exception:
        vmem_cap = None
    if vmem_cap is None:
        vmem_cap = 64 * 1024 * 1024 if "v7" in kind else 128 * 1024 * 1024
    if vmem_cap >= 128 * 1024 * 1024:
        vmem_limit = 100 * 1024 * 1024                            # v5e / v6e: 128 MiB
    else:
        vmem_limit = min(48 * 1024 * 1024, vmem_cap * 3 // 4)     # v7x: 64 MiB physical
    return is_v5e, vmem_limit


def _make_downsample_conv_kernel(THO, WOP, CP, TC, fuse_k):
    """3x3 / stride-2 / pad-1 conv: one (batch elem, row tile, COUT tile) per grid step.

    Tap (ky, kx) of output pixel (oy, ox) reads slab[ky][kx % 2][oy, ox + kx // 2, :].
    """

    def kernel(t00, t01, t10, t11, t20, t21, w_ref, b_ref, o_ref):
        slabs = ((t00, t01), (t10, t11), (t20, t21))

        def patch(ky, kx):
            src = slabs[ky][kx % 2]
            return src[:, pl.ds(kx // 2, WOP), :].reshape(THO * WOP, CP)

        if fuse_k:
            # Small contraction dim: fuse the 9 taps into one big-K MXU matmul.
            im2col = jnp.concatenate(
                [patch(ky, kx) for ky in range(3) for kx in range(3)], axis=-1)
            acc = jnp.dot(im2col, w_ref[...], preferred_element_type=jnp.float32)
        else:
            # CP >= 256: no materialized im2col — accumulate 9 dots in f32.
            acc = jnp.zeros((THO * WOP, TC), jnp.float32)
            tap = 0
            for ky in range(3):
                for kx in range(3):
                    acc = acc + jnp.dot(patch(ky, kx),
                                        w_ref[pl.ds(tap * CP, CP), :],
                                        preferred_element_type=jnp.float32)
                    tap += 1
        acc = acc + b_ref[...].astype(jnp.float32)        # (1, TC) broadcast
        o_ref[...] = acc.reshape(THO, WOP, TC).astype(o_ref.dtype)

    return kernel


@functools.partial(jax.jit, static_argnames=("padding",))
def downsample_conv2d(x_nchw, w_oihw, b, padding=1):
    """Equivalent of nn.Conv2d(C, Cout, 3, stride=2, padding=1)(x), NCHW in / NCHW out."""
    assert padding == 1, "only the Downsample default padding=1 path is implemented"
    N, C, H, W = x_nchw.shape
    COUT = w_oihw.shape[0]
    HO = (H + 2 * padding - 3) // 2 + 1
    WO = (W + 2 * padding - 3) // 2 + 1

    is_v5e, vmem_limit = _tpu_config()
    itemsize = jnp.dtype(x_nchw.dtype).itemsize

    CP = _round_up(C, 128)                          # lane-dense contraction dim
    TC = 128 if (is_v5e or COUT <= 128) else 256    # fill the v6e/v7x 2x256x256 MXU
    COUTP = _round_up(COUT, TC)
    JT = COUTP // TC

    # ---- output-row tiling --------------------------------------------------------
    WOP = _round_up(WO, 8)                          # sublane-aligned collapsed reshapes
    THO = max(1, min(HO, max(8, 512 // WOP)))       # target matmul M = THO*WOP ~ 512+

    def step_bytes(tho):                            # rough per-grid-step VMEM estimate
        taps = 2 * 6 * tho * (WOP + 1) * CP * itemsize   # double-buffered tap blocks
        wgt = 2 * 9 * CP * TC * itemsize
        outb = 2 * tho * WOP * TC * itemsize
        live = 9 * tho * WOP * CP * itemsize + 4 * tho * WOP * TC
        return taps + wgt + outb + live

    while THO > 8 and step_bytes(THO) > (vmem_limit * 3) // 5:
        THO = (THO + 1) // 2
    NT = -(-HO // THO)
    THO = -(-HO // NT)                              # balance tiles -> minimal row padding
    HOP = NT * THO

    # ---- NCHW -> NHWC, spatial + channel zero padding -----------------------------
    HP_IN = 2 * HOP + 1                             # rows needed by the row-tiled taps
    WP_IN = 2 * WOP + 1
    x = jnp.transpose(x_nchw, (0, 2, 3, 1))
    x = jnp.pad(x, ((0, 0), (1, HP_IN - 1 - H), (1, WP_IN - 1 - W), (0, CP - C)))

    # ---- halo-free slab split: 3 kernel-row groups x 2 column parities ------------
    slabs = []
    for ky in range(3):
        for cpar in range(2):
            wcols = WOP + 1 if cpar == 0 else WOP
            slabs.append(x[:, ky:ky + 2 * HOP - 1:2, cpar:cpar + 2 * wcols - 1:2, :])

    # ---- weights: (Cout, Cin, ky, kx) -> (9*CP, COUTP), K ordered (ky, kx, Cin) ----
    w_k = jnp.transpose(w_oihw, (2, 3, 1, 0))
    w_k = jnp.pad(w_k, ((0, 0), (0, 0), (0, CP - C), (0, COUTP - COUT)))
    w_k = w_k.reshape(9 * CP, COUTP)
    b_k = jnp.pad(b, (0, COUTP - COUT)).reshape(1, COUTP)

    # ---- grid order: minimize re-fetched HBM bytes ---------------------------------
    act_bytes = sum(int(np.prod(s.shape)) for s in slabs) * itemsize
    w_bytes = int(np.prod(w_k.shape)) * jnp.dtype(w_oihw.dtype).itemsize
    weights_outer = (w_bytes + JT * act_bytes) <= (act_bytes + N * NT * w_bytes)
    if weights_outer:          # (j, n, t): the weight tile stays resident across n, t
        grid = (JT, N, NT)
        tap_idx = lambda j, n, t: (n, t, 0, 0)
        wgt_idx = lambda j, n, t: (0, j)
        out_idx = lambda j, n, t: (n, t, 0, j)
    else:                      # (n, t, j): the activation tile stays resident across j
        grid = (N, NT, JT)
        tap_idx = lambda n, t, j: (n, t, 0, 0)
        wgt_idx = lambda n, t, j: (0, j)
        out_idx = lambda n, t, j: (n, t, 0, j)

    in_specs = [pl.BlockSpec((None, THO, s.shape[2], CP), tap_idx) for s in slabs]
    in_specs += [pl.BlockSpec((9 * CP, TC), wgt_idx),
                 pl.BlockSpec((1, TC), wgt_idx)]
    out_spec = pl.BlockSpec((None, THO, WOP, TC), out_idx)

    kernel = _make_downsample_conv_kernel(THO, WOP, CP, TC, fuse_k=(CP <= 128))

    out = pl.pallas_call(
        kernel,
        out_shape=jax.ShapeDtypeStruct((N, HOP, WOP, COUTP), x_nchw.dtype),
        grid=grid,
        in_specs=in_specs,
        out_specs=out_spec,
        compiler_params=pltpu.CompilerParams(
            dimension_semantics=("parallel", "parallel", "arbitrary"),
            vmem_limit_bytes=vmem_limit,
        ),
    )(*slabs, w_k, b_k)

    out = out[:, :HO, :WO, :COUT]                   # drop row / col / COUT padding
    return jnp.transpose(out, (0, 3, 1, 2))         # back to NCHW


if __name__ == "__main__":
    def ref_conv(x, w, b):
        return jax.lax.conv_general_dilated(
            x, w, window_strides=(2, 2), padding=((1, 1), (1, 1)),
            dimension_numbers=("NCHW", "OIHW", "NCHW"),
        ) + b[None, :, None, None]

    key = jax.random.PRNGKey(0)

    # 1) Downsample(channels=4, use_conv=True): small smoke test, f32 + bf16
    #    (exercises the fused big-K path, CP = 128).
    k1, k2, k3, key = jax.random.split(key, 4)
    N, C, H, W = 2, 4, 16, 16
    x = jax.random.normal(k1, (N, C, H, W), dtype=jnp.float32)
    w = 0.1 * jax.random.normal(k2, (C, C, 3, 3), dtype=jnp.float32)
    b = 0.1 * jax.random.normal(k3, (C,), dtype=jnp.float32)
    y = jax.block_until_ready(downsample_conv2d(x, w, b, padding=1))
    ref = np.asarray(ref_conv(x, w, b))
    assert y.shape == (N, C, H // 2, W // 2), y.shape
    assert np.allclose(np.asarray(y), ref, atol=1e-4, rtol=1e-4)

    y_bf16 = downsample_conv2d(x.astype(jnp.bfloat16), w.astype(jnp.bfloat16),
                               b.astype(jnp.bfloat16), padding=1)
    y_bf16 = np.asarray(jax.block_until_ready(y_bf16)).astype(np.float32)
    assert np.allclose(y_bf16, ref, atol=1e-1, rtol=1e-1)

    # 2) Odd spatial size (exercises output row/col padding + cropping).
    k1, k2, k3, key = jax.random.split(key, 4)
    N, C, H, W = 1, 4, 13, 13
    x = jax.random.normal(k1, (N, C, H, W), dtype=jnp.float32)
    w = 0.1 * jax.random.normal(k2, (C, C, 3, 3), dtype=jnp.float32)
    b = 0.1 * jax.random.normal(k3, (C,), dtype=jnp.float32)
    y = jax.block_until_ready(downsample_conv2d(x, w, b, padding=1))
    assert y.shape == (N, C, 7, 7), y.shape
    assert np.allclose(np.asarray(y), np.asarray(ref_conv(x, w, b)),
                       atol=1e-4, rtol=1e-4)

    # 3) Realistic channel counts in bf16 (exercises the 9-accumulated-dot path, the
    #    multi-row-tile grid, and COUT padding to the MXU tile width + crop).
    k1, k2, k3, key = jax.random.split(key, 4)
    N, C, COUT, H, W = 1, 256, 320, 64, 64
    x3 = jax.random.normal(k1, (N, C, H, W), dtype=jnp.float32)
    w3 = 0.05 * jax.random.normal(k2, (COUT, C, 3, 3), dtype=jnp.float32)
    b3 = 0.1 * jax.random.normal(k3, (COUT,), dtype=jnp.float32)
    y3 = downsample_conv2d(x3.astype(jnp.bfloat16), w3.astype(jnp.bfloat16),
                           b3.astype(jnp.bfloat16), padding=1)
    y3 = np.asarray(jax.block_until_ready(y3)).astype(np.float32)
    ref3 = np.asarray(ref_conv(x3, w3, b3))
    assert y3.shape == (N, COUT, H // 2, W // 2), y3.shape
    assert np.allclose(y3, ref3, atol=2e-1, rtol=2e-1)

    print("KERNEL_OK")
</pallas_src>

<mosaic_0001>
module attributes {stable_mosaic.version = 11 : i64} {
  func.func @kernel(%arg0: i32, %arg1: i32, %arg2: i32, %arg3: memref<1x8x9x128xf32, #tpu.memory_space<vmem>>, %arg4: memref<1x8x8x128xf32, #tpu.memory_space<vmem>>, %arg5: memref<1x8x9x128xf32, #tpu.memory_space<vmem>>, %arg6: memref<1x8x8x128xf32, #tpu.memory_space<vmem>>, %arg7: memref<1x8x9x128xf32, #tpu.memory_space<vmem>>, %arg8: memref<1x8x8x128xf32, #tpu.memory_space<vmem>>, %arg9: memref<1152x128xf32, #tpu.memory_space<vmem>>, %arg10: memref<1x128xf32, #tpu.memory_space<vmem>>, %arg11: memref<1x8x8x128xf32, #tpu.memory_space<vmem>>) attributes {dimension_semantics = [#tpu.dimension_semantics<parallel>, #tpu.dimension_semantics<parallel>, #tpu.dimension_semantics<arbitrary>], iteration_bounds = array<i64: 1, 2, 1>, scalar_prefetch = 0 : i64, scratch_operands = 0 : i64, tpu.core_type = #tpu.core_type<tc>, window_params = [{transform_indices = @transform_0, window_bounds = array<i64: 1, 8, 9, 128>}, {transform_indices = @transform_1, window_bounds = array<i64: 1, 8, 8, 128>}, {transform_indices = @transform_2, window_bounds = array<i64: 1, 8, 9, 128>}, {transform_indices = @transform_3, window_bounds = array<i64: 1, 8, 8, 128>}, {transform_indices = @transform_4, window_bounds = array<i64: 1, 8, 9, 128>}, {transform_indices = @transform_5, window_bounds = array<i64: 1, 8, 8, 128>}, {transform_indices = @transform_6, window_bounds = array<i64: 1152, 128>}, {transform_indices = @transform_7, window_bounds = array<i64: 1, 128>}, {transform_indices = @transform_8, window_bounds = array<i64: 1, 8, 8, 128>}]} {
    %c0 = arith.constant 0 : index
    %c0_0 = arith.constant 0 : index
    %c0_1 = arith.constant 0 : index
    %c0_2 = arith.constant 0 : index
    %0 = vector.load %arg3[%c0, %c0_0, %c0_1, %c0_2] : memref<1x8x9x128xf32, #tpu.memory_space<vmem>>, vector<1x8x8x128xf32>
    %1 = vector.shape_cast %0 : vector<1x8x8x128xf32> to vector<8x8x128xf32>
    %2 = vector.shape_cast %1 : vector<8x8x128xf32> to vector<64x128xf32>
    %c0_3 = arith.constant 0 : index
    %c0_4 = arith.constant 0 : index
    %c0_5 = arith.constant 0 : index
    %c0_6 = arith.constant 0 : index
    %3 = vector.load %arg4[%c0_3, %c0_4, %c0_5, %c0_6] : memref<1x8x8x128xf32, #tpu.memory_space<vmem>>, vector<1x8x8x128xf32>
    %4 = vector.shape_cast %3 : vector<1x8x8x128xf32> to vector<8x8x128xf32>
    %5 = vector.shape_cast %4 : vector<8x8x128xf32> to vector<64x128xf32>
    %c0_7 = arith.constant 0 : index
    %c0_8 = arith.constant 0 : index
    %c1 = arith.constant 1 : index
    %c0_9 = arith.constant 0 : index
    %6 = vector.load %arg3[%c0_7, %c0_8, %c1, %c0_9] : memref<1x8x9x128xf32, #tpu.memory_space<vmem>>, vector<1x8x8x128xf32>
    %7 = vector.shape_cast %6 : vector<1x8x8x128xf32> to vector<8x8x128xf32>
    %8 = vector.shape_cast %7 : vector<8x8x128xf32> to vector<64x128xf32>
    %c0_10 = arith.constant 0 : index
    %c0_11 = arith.constant 0 : index
    %c0_12 = arith.constant 0 : index
    %c0_13 = arith.constant 0 : index
    %9 = vector.load %arg5[%c0_10, %c0_11, %c0_12, %c0_13] : memref<1x8x9x128xf32, #tpu.memory_space<vmem>>, vector<1x8x8x128xf32>
    %10 = vector.shape_cast %9 : vector<1x8x8x128xf32> to vector<8x8x128xf32>
    %11 = vector.shape_cast %10 : vector<8x8x128xf32> to vector<64x128xf32>
    %c0_14 = arith.constant 0 : index
    %c0_15 = arith.constant 0 : index
    %c0_16 = arith.constant 0 : index
    %c0_17 = arith.constant 0 : index
    %12 = vector.load %arg6[%c0_14, %c0_15, %c0_16, %c0_17] : memref<1x8x8x128xf32, #tpu.memory_space<vmem>>, vector<1x8x8x128xf32>
    %13 = vector.shape_cast %12 : vector<1x8x8x128xf32> to vector<8x8x128xf32>
    %14 = vector.shape_cast %13 : vector<8x8x128xf32> to vector<64x128xf32>
    %c0_18 = arith.constant 0 : index
    %c0_19 = arith.constant 0 : index
    %c1_20 = arith.constant 1 : index
    %c0_21 = arith.constant 0 : index
    %15 = vector.load %arg5[%c0_18, %c0_19, %c1_20, %c0_21] : memref<1x8x9x128xf32, #tpu.memory_space<vmem>>, vector<1x8x8x128xf32>
    %16 = vector.shape_cast %15 : vector<1x8x8x128xf32> to vector<8x8x128xf32>
    %17 = vector.shape_cast %16 : vector<8x8x128xf32> to vector<64x128xf32>
    %c0_22 = arith.constant 0 : index
    %c0_23 = arith.constant 0 : index
    %c0_24 = arith.constant 0 : index
    %c0_25 = arith.constant 0 : index
    %18 = vector.load %arg7[%c0_22, %c0_23, %c0_24, %c0_25] : memref<1x8x9x128xf32, #tpu.memory_space<vmem>>, vector<1x8x8x128xf32>
    %19 = vector.shape_cast %18 : vector<1x8x8x128xf32> to vector<8x8x128xf32>
    %20 = vector.shape_cast %19 : vector<8x8x128xf32> to vector<64x128xf32>
    %c0_26 = arith.constant 0 : index
    %c0_27 = arith.constant 0 : index
    %c0_28 = arith.constant 0 : index
    %c0_29 = arith.constant 0 : index
    %21 = vector.load %arg8[%c0_26, %c0_27, %c0_28, %c0_29] : memref<1x8x8x128xf32, #tpu.memory_space<vmem>>, vector<1x8x8x128xf32>
    %22 = vector.shape_cast %21 : vector<1x8x8x128xf32> to vector<8x8x128xf32>
    %23 = vector.shape_cast %22 : vector<8x8x128xf32> to vector<64x128xf32>
    %c0_30 = arith.constant 0 : index
    %c0_31 = arith.constant 0 : index
    %c1_32 = arith.constant 1 : index
    %c0_33 = arith.constant 0 : index
    %24 = vector.load %arg7[%c0_30, %c0_31, %c1_32, %c0_33] : memref<1x8x9x128xf32, #tpu.memory_space<vmem>>, vector<1x8x8x128xf32>
    %25 = vector.shape_cast %24 : vector<1x8x8x128xf32> to vector<8x8x128xf32>
    %26 = vector.shape_cast %25 : vector<8x8x128xf32> to vector<64x128xf32>
    %27 = tpu.concatenate %2, %5, %8, %11, %14, %17, %20, %23, %26 in 1 : vector<64x128xf32>, vector<64x128xf32>, vector<64x128xf32>, vector<64x128xf32>, vector<64x128xf32>, vector<64x128xf32>, vector<64x128xf32>, vector<64x128xf32>, vector<64x128xf32> -> vector<64x1152xf32>
    %c0_34 = arith.constant 0 : index
    %c0_35 = arith.constant 0 : index
    %28 = vector.load %arg9[%c0_34, %c0_35] : memref<1152x128xf32, #tpu.memory_space<vmem>>, vector<1152x128xf32>
    %cst = arith.constant dense<0.000000e+00> : vector<64x128xf32>
    %29 = tpu.matmul %27, %28, %cst {dimension_numbers = #tpu.dot_dimension_numbers<[1], [0], [0], [1], [0, 0, 1, 1], [], []>} : vector<64x1152xf32>, vector<1152x128xf32>, vector<64x128xf32> -> vector<64x128xf32>
    %c0_36 = arith.constant 0 : index
    %c0_37 = arith.constant 0 : index
    %30 = vector.load %arg10[%c0_36, %c0_37] : memref<1x128xf32, #tpu.memory_space<vmem>>, vector<1x128xf32>
    %31 = vector.broadcast %30 : vector<1x128xf32> to vector<64x128xf32>
    %32 = arith.addf %29, %31 : vector<64x128xf32>
    %33 = vector.shape_cast %32 : vector<64x128xf32> to vector<8x8x128xf32>
    %c0_38 = arith.constant 0 : index
    %c0_39 = arith.constant 0 : index
    %c0_40 = arith.constant 0 : index
    %c0_41 = arith.constant 0 : index
    %34 = vector.load %arg11[%c0_38, %c0_39, %c0_40, %c0_41] : memref<1x8x8x128xf32, #tpu.memory_space<vmem>>, vector<1x8x8x128xf32>
    %35 = vector.shape_cast %34 : vector<1x8x8x128xf32> to vector<8x8x128xf32>
    %36 = vector.shape_cast %33 : vector<8x8x128xf32> to vector<1x8x8x128xf32>
    tpu.vector_store %arg11[%c0_38, %c0_39, %c0_40, %c0_41], %36 {strides = array<i32>} : memref<1x8x8x128xf32, #tpu.memory_space<vmem>>, vector<1x8x8x128xf32>,
    return
  }
  func.func @transform_0(%arg0: i32, %arg1: i32, %arg2: i32) -> (i32, i32, i32, i32) {
    %c0_i32 = arith.constant 0 : i32
    %c0_i32_0 = arith.constant 0 : i32
    %c0_i32_1 = arith.constant 0 : i32
    return %arg1, %arg2, %c0_i32, %c0_i32_0 : i32, i32, i32, i32
  }
  func.func @transform_1(%arg0: i32, %arg1: i32, %arg2: i32) -> (i32, i32, i32, i32) {
    %c0_i32 = arith.constant 0 : i32
    %c0_i32_0 = arith.constant 0 : i32
    %c0_i32_1 = arith.constant 0 : i32
    return %arg1, %arg2, %c0_i32, %c0_i32_0 : i32, i32, i32, i32
  }
  func.func @transform_2(%arg0: i32, %arg1: i32, %arg2: i32) -> (i32, i32, i32, i32) {
    %c0_i32 = arith.constant 0 : i32
    %c0_i32_0 = arith.constant 0 : i32
    %c0_i32_1 = arith.constant 0 : i32
    return %arg1, %arg2, %c0_i32, %c0_i32_0 : i32, i32, i32, i32
  }
  func.func @transform_3(%arg0: i32, %arg1: i32, %arg2: i32) -> (i32, i32, i32, i32) {
    %c0_i32 = arith.constant 0 : i32
    %c0_i32_0 = arith.constant 0 : i32
    %c0_i32_1 = arith.constant 0 : i32
    return %arg1, %arg2, %c0_i32, %c0_i32_0 : i32, i32, i32, i32
  }
  func.func @transform_4(%arg0: i32, %arg1: i32, %arg2: i32) -> (i32, i32, i32, i32) {
    %c0_i32 = arith.constant 0 : i32
    %c0_i32_0 = arith.constant 0 : i32
    %c0_i32_1 = arith.constant 0 : i32
    return %arg1, %arg2, %c0_i32, %c0_i32_0 : i32, i32, i32, i32
  }
  func.func @transform_5(%arg0: i32, %arg1: i32, %arg2: i32) -> (i32, i32, i32, i32) {
    %c0_i32 = arith.constant 0 : i32
    %c0_i32_0 = arith.constant 0 : i32
    %c0_i32_1 = arith.constant 0 : i32
    return %arg1, %arg2, %c0_i32, %c0_i32_0 : i32, i32, i32, i32
  }
  func.func @transform_6(%arg0: i32, %arg1: i32, %arg2: i32) -> (i32, i32) {
    %c0_i32 = arith.constant 0 : i32
    %c0_i32_0 = arith.constant 0 : i32
    return %c0_i32, %arg0 : i32, i32
  }
  func.func @transform_7(%arg0: i32, %arg1: i32, %arg2: i32) -> (i32, i32) {
    %c0_i32 = arith.constant 0 : i32
    %c0_i32_0 = arith.constant 0 : i32
    return %c0_i32, %arg0 : i32, i32
  }
  func.func @transform_8(%arg0: i32, %arg1: i32, %arg2: i32) -> (i32, i32, i32, i32) {
    %c0_i32 = arith.constant 0 : i32
    %c0_i32_0 = arith.constant 0 : i32
    return %arg1, %arg2, %c0_i32, %arg0 : i32, i32, i32, i32
  }
}

</mosaic_0001>

<llo_original>
// kernel: downsample_conv2d.1
$region0: #{downsample_conv2d.1}
  #allocation0 [shape = 'u32[]', space=smem, size = 0x4, offset = 0x4, fixed_abs, tag = 'smem constant byte address 0x4 - core index']
  #allocation1 [shape = 'u32[144,128]{1,0:T(1,128)}', space=vmem, size = 0x12000, scoped, tag = 'internal scratch']
  %s0 = inlined_call_operand.vmem [shape: f32[2,8,9,128], index: 0, kind: input, shape index: {}]
  %s1 = inlined_call_operand.vmem [shape: f32[2,8,8,128], index: 1, kind: input, shape index: {}]
  %s2 = inlined_call_operand.vmem [shape: f32[2,8,9,128], index: 2, kind: input, shape index: {}]
  %s3 = inlined_call_operand.vmem [shape: f32[2,8,8,128], index: 3, kind: input, shape index: {}]
  %s4 = inlined_call_operand.vmem [shape: f32[2,8,9,128], index: 4, kind: input, shape index: {}]
  %s5 = inlined_call_operand.vmem [shape: f32[2,8,8,128], index: 5, kind: input, shape index: {}]
  %s6 = inlined_call_operand.vmem [shape: f32[1152,128], index: 6, kind: input, shape index: {}]
  %s7 = inlined_call_operand.vmem [shape: f32[1,128], index: 7, kind: input, shape index: {}]
  %s8 = inlined_call_operand.vmem [shape: f32[2,8,8,128], index: 8, kind: output, shape index: {}]
  %s9 = sld [smem:[#allocation0]]
  $region65: #{downsample_conv2d.1} parent=0
    _
  %s11 = ssub.s32 1, %s9
  %s12 = scalar_select 0, %s11, %s9
  loop: start=0, step=1, limit=4
  $region2: #{downsample_conv2d.1} parent=0 // loop_pre_header
    _
  $region3: #{downsample_conv2d.1} parent=0 // loop_header
    %s14 = sphi 0, %s18
    %p15 = scmp.ge.s32.totalorder %s14, 4
    %s21 = sphi 0, %s40
    %s22 = sphi 0, %s36
    %s23 = sphi 0, %s32
    %s24 = sphi 0, %s21
    %s25 = sphi 0, %s22
    %s26 = sphi 0, %s23
    %s27 = sphi 0, %s24
    %s28 = sphi 0, %s25
    %s29 = sphi 0, %s26
    %s45 = sphi 0, %s47
    %s48 = sphi 0, %s45
    %s49 = sphi 0, %s48
    %s65 = sphi 0, %s49
    %s73 = sphi 0, %s75
    %s76 = sphi 0, %s73
    %s77 = sphi 0, %s76
    %s93 = sphi 0, %s77
    %s101 = sphi 0, %s103
    %s104 = sphi 0, %s101
    %s105 = sphi 0, %s104
    %s121 = sphi 0, %s105
    %s129 = sphi 0, %s131
    %s132 = sphi 0, %s129
    %s133 = sphi 0, %s132
    %s149 = sphi 0, %s133
    %s157 = sphi 0, %s159
    %s160 = sphi 0, %s157
    %s161 = sphi 0, %s160
    %s177 = sphi 0, %s161
    %s185 = sphi 0, %s187
    %s188 = sphi 0, %s185
    %s189 = sphi 0, %s188
    %s205 = sphi 0, %s189
    %s211 = sphi 0, %s213
    %s214 = sphi 0, %s211
    %s215 = sphi 0, %s214
    %s231 = sphi 0, %s215
    %s237 = sphi 0, %s239
    %s240 = sphi 0, %s237
    %s241 = sphi 0, %s240
    %s257 = sphi 0, %s241
    %s267 = sphi 0, %s269
    %s270 = sphi 0, %s267
    %s271 = sphi 0, %s270
    %s287 = sphi 0, %s271
  $region4: #{downsample_conv2d.1} parent=0 // loop_header_branch
    %17 = sbr.rel (%p15) target = $region8
  $region5: #{downsample_conv2d.1} parent=0 // loop_body
    %s19 = ssub.s32 %s14, 1
    %s20 = ssub.s32 %s14, 2
    %s30 = sadd.s32 1, %s23
    %p31 = scmp.ge.s32.totalorder %s30, 1
    %s32 = scalar_select %p31, 0, %s30
    %s33 = sadd.s32 1, %s22
    %s34 = scalar_select %p31, %s33, %s22
    %p35 = scmp.ge.s32.totalorder %s34, 2
    %s36 = scalar_select %p35, 0, %s34
    %s37 = sadd.s32 1, %s21
    %s38 = scalar_select %p35, %s37, %s21
    %p39 = scmp.ge.s32.totalorder %s38, 1
    %s40 = scalar_select %p39, 0, %s38
    %s41 = ssub.s32 %s22, %s36
    %s42 = ssub.s32 %s23, %s32
    %s43 = sor.u32 %s41, %s42
    %p44 = scmp.eq.s32.totalorder %s43, 0
    %s46 = sadd.s32 %s45, 1
    %s47 = scalar_select %p44, %s45, %s46
    %p50 = pneg %p44
    %p51 = scmp.eq.s32.totalorder %s14, 1
    %p52 = por %p50, %p51
    %p53 = scmp.ne.s32.totalorder %s45, %s48
    %p54 = scmp.eq.s32.totalorder %s14, 0
    %p55 = por %p53, %p54
    %p56 = scmp.ne.s32.totalorder %s45, %s48
    %p57 = scmp.eq.s32.totalorder %s19, 1
    %p58 = por %p56, %p57
    %p59 = scmp.ne.s32.totalorder %s48, %s49
    %p60 = scmp.eq.s32.totalorder %s19, 0
    %p61 = por %p59, %p60
    %p62 = scmp.ne.s32.totalorder %s48, %s49
    %p63 = scmp.eq.s32.totalorder %s20, 1
    %p64 = por %p62, %p63
    %p66 = scmp.ne.s32.totalorder %s49, %s65
    %p67 = scmp.eq.s32.totalorder %s20, 0
    %p68 = por %p66, %p67
    %s69 = ssub.s32 %s22, %s36
    %s70 = ssub.s32 %s23, %s32
    %s71 = sor.u32 %s69, %s70
    %p72 = scmp.eq.s32.totalorder %s71, 0
    %s74 = sadd.s32 %s73, 1
    %s75 = scalar_select %p72, %s73, %s74
    %p78 = pneg %p72
    %p79 = scmp.eq.s32.totalorder %s14, 1
    %p80 = por %p78, %p79
    %p81 = scmp.ne.s32.totalorder %s73, %s76
    %p82 = scmp.eq.s32.totalorder %s14, 0
    %p83 = por %p81, %p82
    %p84 = scmp.ne.s32.totalorder %s73, %s76
    %p85 = scmp.eq.s32.totalorder %s19, 1
    %p86 = por %p84, %p85
    %p87 = scmp.ne.s32.totalorder %s76, %s77
    %p88 = scmp.eq.s32.totalorder %s19, 0
    %p89 = por %p87, %p88
    %p90 = scmp.ne.s32.totalorder %s76, %s77
    %p91 = scmp.eq.s32.totalorder %s20, 1
    %p92 = por %p90, %p91
    %p94 = scmp.ne.s32.totalorder %s77, %s93
    %p95 = scmp.eq.s32.totalorder %s20, 0
    %p96 = por %p94, %p95
    %s97 = ssub.s32 %s22, %s36
    %s98 = ssub.s32 %s23, %s32
    %s99 = sor.u32 %s97, %s98
    %p100 = scmp.eq.s32.totalorder %s99, 0
    %s102 = sadd.s32 %s101, 1
    %s103 = scalar_select %p100, %s101, %s102
    %p106 = pneg %p100
    %p107 = scmp.eq.s32.totalorder %s14, 1
    %p108 = por %p106, %p107
    %p109 = scmp.ne.s32.totalorder %s101, %s104
    %p110 = scmp.eq.s32.totalorder %s14, 0
    %p111 = por %p109, %p110
    %p112 = scmp.ne.s32.totalorder %s101, %s104
    %p113 = scmp.eq.s32.totalorder %s19, 1
    %p114 = por %p112, %p113
    %p115 = scmp.ne.s32.totalorder %s104, %s105
    %p116 = scmp.eq.s32.totalorder %s19, 0
    %p117 = por %p115, %p116
    %p118 = scmp.ne.s32.totalorder %s104, %s105
    %p119 = scmp.eq.s32.totalorder %s20, 1
    %p120 = por %p118, %p119
    %p122 = scmp.ne.s32.totalorder %s105, %s121
    %p123 = scmp.eq.s32.totalorder %s20, 0
    %p124 = por %p122, %p123
    %s125 = ssub.s32 %s22, %s36
    %s126 = ssub.s32 %s23, %s32
    %s127 = sor.u32 %s125, %s126
    %p128 = scmp.eq.s32.totalorder %s127, 0
    %s130 = sadd.s32 %s129, 1
    %s131 = scalar_select %p128, %s129, %s130
    %p134 = pneg %p128
    %p135 = scmp.eq.s32.totalorder %s14, 1
    %p136 = por %p134, %p135
    %p137 = scmp.ne.s32.totalorder %s129, %s132
    %p138 = scmp.eq.s32.totalorder %s14, 0
    %p139 = por %p137, %p138
    %p140 = scmp.ne.s32.totalorder %s129, %s132
    %p141 = scmp.eq.s32.totalorder %s19, 1
    %p142 = por %p140, %p141
    %p143 = scmp.ne.s32.totalorder %s132, %s133
    %p144 = scmp.eq.s32.totalorder %s19, 0
    %p145 = por %p143, %p144
    %p146 = scmp.ne.s32.totalorder %s132, %s133
    %p147 = scmp.eq.s32.totalorder %s20, 1
    %p148 = por %p146, %p147
    %p150 = scmp.ne.s32.totalorder %s133, %s149
    %p151 = scmp.eq.s32.totalorder %s20, 0
    %p152 = por %p150, %p151
    %s153 = ssub.s32 %s22, %s36
    %s154 = ssub.s32 %s23, %s32
    %s155 = sor.u32 %s153, %s154
    %p156 = scmp.eq.s32.totalorder %s155, 0
    %s158 = sadd.s32 %s157, 1
    %s159 = scalar_select %p156, %s157, %s158
    %p162 = pneg %p156
    %p163 = scmp.eq.s32.totalorder %s14, 1
    %p164 = por %p162, %p163
    %p165 = scmp.ne.s32.totalorder %s157, %s160
    %p166 = scmp.eq.s32.totalorder %s14, 0
    %p167 = por %p165, %p166
    %p168 = scmp.ne.s32.totalorder %s157, %s160
    %p169 = scmp.eq.s32.totalorder %s19, 1
    %p170 = por %p168, %p169
    %p171 = scmp.ne.s32.totalorder %s160, %s161
    %p172 = scmp.eq.s32.totalorder %s19, 0
    %p173 = por %p171, %p172
    %p174 = scmp.ne.s32.totalorder %s160, %s161
    %p175 = scmp.eq.s32.totalorder %s20, 1
    %p176 = por %p174, %p175
    %p178 = scmp.ne.s32.totalorder %s161, %s177
    %p179 = scmp.eq.s32.totalorder %s20, 0
    %p180 = por %p178, %p179
    %s181 = ssub.s32 %s22, %s36
    %s182 = ssub.s32 %s23, %s32
    %s183 = sor.u32 %s181, %s182
    %p184 = scmp.eq.s32.totalorder %s183, 0
    %s186 = sadd.s32 %s185, 1
    %s187 = scalar_select %p184, %s185, %s186
    %p190 = pneg %p184
    %p191 = scmp.eq.s32.totalorder %s14, 1
    %p192 = por %p190, %p191
    %p193 = scmp.ne.s32.totalorder %s185, %s188
    %p194 = scmp.eq.s32.totalorder %s14, 0
    %p195 = por %p193, %p194
    %p196 = scmp.ne.s32.totalorder %s185, %s188
    %p197 = scmp.eq.s32.totalorder %s19, 1
    %p198 = por %p196, %p197
    %p199 = scmp.ne.s32.totalorder %s188, %s189
    %p200 = scmp.eq.s32.totalorder %s19, 0
    %p201 = por %p199, %p200
    %p202 = scmp.ne.s32.totalorder %s188, %s189
    %p203 = scmp.eq.s32.totalorder %s20, 1
    %p204 = por %p202, %p203
    %p206 = scmp.ne.s32.totalorder %s189, %s205
    %p207 = scmp.eq.s32.totalorder %s20, 0
    %p208 = por %p206, %p207
    %s209 = ssub.s32 %s21, %s40
    %p210 = scmp.eq.s32.totalorder %s209, 0
    %s212 = sadd.s32 %s211, 1
    %s213 = scalar_select %p210, %s211, %s212
    %p216 = pneg %p210
    %p217 = scmp.eq.s32.totalorder %s14, 1
    %p218 = por %p216, %p217
    %p219 = scmp.ne.s32.totalorder %s211, %s214
    %p220 = scmp.eq.s32.totalorder %s14, 0
    %p221 = por %p219, %p220
    %p222 = scmp.ne.s32.totalorder %s211, %s214
    %p223 = scmp.eq.s32.totalorder %s19, 1
    %p224 = por %p222, %p223
    %p225 = scmp.ne.s32.totalorder %s214, %s215
    %p226 = scmp.eq.s32.totalorder %s19, 0
    %p227 = por %p225, %p226
    %p228 = scmp.ne.s32.totalorder %s214, %s215
    %p229 = scmp.eq.s32.totalorder %s20, 1
    %p230 = por %p228, %p229
    %p232 = scmp.ne.s32.totalorder %s215, %s231
    %p233 = scmp.eq.s32.totalorder %s20, 0
    %p234 = por %p232, %p233
    %s235 = ssub.s32 %s21, %s40
    %p236 = scmp.eq.s32.totalorder %s235, 0
    %s238 = sadd.s32 %s237, 1
    %s239 = scalar_select %p236, %s237, %s238
    %p242 = pneg %p236
    %p243 = scmp.eq.s32.totalorder %s14, 1
    %p244 = por %p242, %p243
    %p245 = scmp.ne.s32.totalorder %s237, %s240
    %p246 = scmp.eq.s32.totalorder %s14, 0
    %p247 = por %p245, %p246
    %p248 = scmp.ne.s32.totalorder %s237, %s240
    %p249 = scmp.eq.s32.totalorder %s19, 1
    %p250 = por %p248, %p249
    %p251 = scmp.ne.s32.totalorder %s240, %s241
    %p252 = scmp.eq.s32.totalorder %s19, 0
    %p253 = por %p251, %p252
    %p254 = scmp.ne.s32.totalorder %s240, %s241
    %p255 = scmp.eq.s32.totalorder %s20, 1
    %p256 = por %p254, %p255
    %p258 = scmp.ne.s32.totalorder %s241, %s257
    %p259 = scmp.eq.s32.totalorder %s20, 0
    %p260 = por %p258, %p259
    %s261 = ssub.s32 %s22, %s36
    %s262 = ssub.s32 %s23, %s32
    %s263 = sor.u32 %s261, %s262
    %s264 = ssub.s32 %s21, %s40
    %s265 = sor.u32 %s263, %s264
    %p266 = scmp.eq.s32.totalorder %s265, 0
    %s268 = sadd.s32 %s267, 1
    %s269 = scalar_select %p266, %s267, %s268
    %p272 = pneg %p266
    %p273 = scmp.eq.s32.totalorder %s14, 1
    %p274 = por %p272, %p273
    %p275 = scmp.ne.s32.totalorder %s267, %s270
    %p276 = scmp.eq.s32.totalorder %s14, 0
    %p277 = por %p275, %p276
    %p278 = scmp.ne.s32.totalorder %s267, %s270
    %p279 = scmp.eq.s32.totalorder %s19, 1
    %p280 = por %p278, %p279
    %p281 = scmp.ne.s32.totalorder %s270, %s271
    %p282 = scmp.eq.s32.totalorder %s19, 0
    %p283 = por %p281, %p282
    %p284 = scmp.ne.s32.totalorder %s270, %s271
    %p285 = scmp.eq.s32.totalorder %s20, 1
    %p286 = por %p284, %p285
    %p288 = scmp.ne.s32.totalorder %s271, %s287
    %p289 = scmp.eq.s32.totalorder %s20, 0
    %p290 = por %p288, %p289
    %p291 = scmp.le.s32.totalorder 1, %s14
    %p292 = scmp.lt.s32.totalorder %s14, 3
    %p293 = pnand %p291, %p292
    %p294 = pneg %p293
    // Predicated region
    $region9: #{downsample_conv2d.1} parent=5 // pred_check
      _
    $region10: #{downsample_conv2d.1} parent=5 // pred_check_branch
      %296 = sbr.rel (%p293) target = $region12
    $region11: #{downsample_conv2d.1} parent=5 // pred_region
      %s297 = ssub.s32 %s14, 1
      // Predicated region
      $region13: #{downsample_conv2d.1} parent=11 // pred_check
        %p298 = pneg %p227
      $region14: #{downsample_conv2d.1} parent=11 // pred_check_branch
        %300 = sbr.rel (%p298) target = $region16
      $region15: #{downsample_conv2d.1} parent=11 // pred_region
        %p301 = scmp.lt.s32.totalorder %s24, 0
        %s302 = scalar_select %p301, %s24, 0
        %s303 = smul.addr %s302, 8
        %s304 = scalar_lea.vmem %s6, %s303
      $region16: #{downsample_conv2d.1} parent=11 // pred_fallthru
        _
      // Predicated region
      $region17: #{downsample_conv2d.1} parent=11 // pred_check
        %p305 = pneg %p253
      $region18: #{downsample_conv2d.1} parent=11 // pred_check_branch
        %307 = sbr.rel (%p305) target = $region20
      $region19: #{downsample_conv2d.1} parent=11 // pred_region
        %p308 = scmp.lt.s32.totalorder %s24, 0
        %s309 = scalar_select %p308, %s24, 0
        %s310 = scalar_lea.vmem %s7, %s309
      $region20: #{downsample_conv2d.1} parent=11 // pred_fallthru
        _
    $region12: #{downsample_conv2d.1} parent=5 // pred_fallthru
      _
    %p311 = scmp.lt.s32.totalorder %s14, 2
    // Predicated region
    $region21: #{downsample_conv2d.1} parent=5 // pred_check
      %p312 = pneg %p311
    $region22: #{downsample_conv2d.1} parent=5 // pred_check_branch
      %314 = sbr.rel (%p312) target = $region24
    $region23: #{downsample_conv2d.1} parent=5 // pred_region
      // Predicated region
      $region25: #{downsample_conv2d.1} parent=23 // pred_check
        %p315 = pneg %p55
      $region26: #{downsample_conv2d.1} parent=23 // pred_check_branch
        %317 = sbr.rel (%p315) target = $region28
      $region27: #{downsample_conv2d.1} parent=23 // pred_region
        %s318 = smul.u32 8, %s23
        %p319 = scmp.lt.s32.totalorder %s22, 1
        %s320 = scalar_select %p319, %s22, 1
        %p321 = scmp.lt.s32.totalorder %s318, 7
        %s322 = scalar_select %p321, %s318, 7
        %s323 = smul.addr %s322, 2
        %s324 = smul.addr %s320, 16
        %s325 = sadd.s32 %s323, %s324
        %s326 = smul.addr %s325, 8
        %s327 = scalar_lea.vmem %s0, %s326
        %s328 = smul.u32 8, %s23
      $region28: #{downsample_conv2d.1} parent=23 // pred_fallthru
        _
      // Predicated region
      $region29: #{downsample_conv2d.1} parent=23 // pred_check
        %p329 = pneg %p83
      $region30: #{downsample_conv2d.1} parent=23 // pred_check_branch
        %331 = sbr.rel (%p329) target = $region32
      $region31: #{downsample_conv2d.1} parent=23 // pred_region
        %s332 = smul.u32 8, %s23
        %p333 = scmp.lt.s32.totalorder %s22, 1
        %s334 = scalar_select %p333, %s22, 1
        %p335 = scmp.lt.s32.totalorder %s332, 7
        %s336 = scalar_select %p335, %s332, 7
        %s337 = smul.addr %s334, 8
        %s338 = sadd.s32 %s336, %s337
        %s339 = smul.addr %s338, 8
        %s340 = scalar_lea.vmem %s1, %s339
        %s341 = smul.u32 8, %s23
      $region32: #{downsample_conv2d.1} parent=23 // pred_fallthru
        _
      // Predicated region
      $region33: #{downsample_conv2d.1} parent=23 // pred_check
        %p342 = pneg %p111
      $region34: #{downsample_conv2d.1} parent=23 // pred_check_branch
        %344 = sbr.rel (%p342) target = $region36
      $region35: #{downsample_conv2d.1} parent=23 // pred_region
        %s345 = smul.u32 8, %s23
        %p346 = scmp.lt.s32.totalorder %s22, 1
        %s347 = scalar_select %p346, %s22, 1
        %p348 = scmp.lt.s32.totalorder %s345, 7
        %s349 = scalar_select %p348, %s345, 7
        %s350 = smul.addr %s349, 2
        %s351 = smul.addr %s347, 16
        %s352 = sadd.s32 %s350, %s351
        %s353 = smul.addr %s352, 8
        %s354 = scalar_lea.vmem %s2, %s353
        %s355 = smul.u32 8, %s23
      $region36: #{downsample_conv2d.1} parent=23 // pred_fallthru
        _
      // Predicated region
      $region37: #{downsample_conv2d.1} parent=23 // pred_check
        %p356 = pneg %p139
      $region38: #{downsample_conv2d.1} parent=23 // pred_check_branch
        %358 = sbr.rel (%p356) target = $region40
      $region39: #{downsample_conv2d.1} parent=23 // pred_region
        %s359 = smul.u32 8, %s23
        %p360 = scmp.lt.s32.totalorder %s22, 1
        %s361 = scalar_select %p360, %s22, 1
        %p362 = scmp.lt.s32.totalorder %s359, 7
        %s363 = scalar_select %p362, %s359, 7
        %s364 = smul.addr %s361, 8
        %s365 = sadd.s32 %s363, %s364
        %s366 = smul.addr %s365, 8
        %s367 = scalar_lea.vmem %s3, %s366
        %s368 = smul.u32 8, %s23
      $region40: #{downsample_conv2d.1} parent=23 // pred_fallthru
        _
      // Predicated region
      $region41: #{downsample_conv2d.1} parent=23 // pred_check
        %p369 = pneg %p167
      $region42: #{downsample_conv2d.1} parent=23 // pred_check_branch
        %371 = sbr.rel (%p369) target = $region44
      $region43: #{downsample_conv2d.1} parent=23 // pred_region
        %s372 = smul.u32 8, %s23
        %p373 = scmp.lt.s32.totalorder %s22, 1
        %s374 = scalar_select %p373, %s22, 1
        %p375 = scmp.lt.s32.totalorder %s372, 7
        %s376 = scalar_select %p375, %s372, 7
        %s377 = smul.addr %s376, 2
        %s378 = smul.addr %s374, 16
        %s379 = sadd.s32 %s377, %s378
        %s380 = smul.addr %s379, 8
        %s381 = scalar_lea.vmem %s4, %s380
        %s382 = smul.u32 8, %s23
      $region44: #{downsample_conv2d.1} parent=23 // pred_fallthru
        _
      // Predicated region
      $region45: #{downsample_conv2d.1} parent=23 // pred_check
        %p383 = pneg %p195
      $region46: #{downsample_conv2d.1} parent=23 // pred_check_branch
        %385 = sbr.rel (%p383) target = $region48
      $region47: #{downsample_conv2d.1} parent=23 // pred_region
        %s386 = smul.u32 8, %s23
        %p387 = scmp.lt.s32.totalorder %s22, 1
        %s388 = scalar_select %p387, %s22, 1
        %p389 = scmp.lt.s32.totalorder %s386, 7
        %s390 = scalar_select %p389, %s386, 7
        %s391 = smul.addr %s388, 8
        %s392 = sadd.s32 %s390, %s391
        %s393 = smul.addr %s392, 8
        %s394 = scalar_lea.vmem %s5, %s393
        %s395 = smul.u32 8, %s23
      $region48: #{downsample_conv2d.1} parent=23 // pred_fallthru
        _
    $region24: #{downsample_conv2d.1} parent=5 // pred_fallthru
      _
    %p396 = scmp.le.s32.totalorder 1, %s14
    %p397 = scmp.lt.s32.totalorder %s14, 3
    %p398 = pnand %p396, %p397
    %p399 = pneg %p398
    // Predicated region
    $region49: #{downsample_conv2d.1} parent=5 // pred_check
      _
    $region50: #{downsample_conv2d.1} parent=5 // pred_check_branch
      %401 = sbr.rel (%p398) target = $region52
    $region51: #{downsample_conv2d.1} parent=5 // pred_region
      %s402 = ssub.s32 %s14, 1
      %s403 = smul.u32 8, %s26
      %p404 = scmp.lt.s32.totalorder %s25, 1
      %s405 = scalar_select %p404, %s25, 1
      %p406 = scmp.lt.s32.totalorder %s403, 7
      %s407 = scalar_select %p406, %s403, 7
      %s408 = smul.addr %s407, 2
      %s409 = smul.addr %s405, 16
      %s410 = sadd.s32 %s408, %s409
      %s411 = smul.addr %s410, 8
      %s412 = scalar_lea.vmem %s0, %s411
      %p413 = pneg %p61
      %p414 = pneg %p58
      %s415 = smul.u32 8, %s26
      %p416 = scmp.lt.s32.totalorder %s25, 1
      %s417 = scalar_select %p416, %s25, 1
      %p418 = scmp.lt.s32.totalorder %s415, 7
      %s419 = scalar_select %p418, %s415, 7
      %s420 = smul.addr %s417, 8
      %s421 = sadd.s32 %s419, %s420
      %s422 = smul.addr %s421, 8
      %s423 = scalar_lea.vmem %s1, %s422
      %p424 = pneg %p89
      %p425 = pneg %p86
      %s426 = smul.u32 8, %s26
      %p427 = scmp.lt.s32.totalorder %s25, 1
      %s428 = scalar_select %p427, %s25, 1
      %p429 = scmp.lt.s32.totalorder %s426, 7
      %s430 = scalar_select %p429, %s426, 7
      %s431 = smul.addr %s430, 2
      %s432 = smul.addr %s428, 16
      %s433 = sadd.s32 %s431, %s432
      %s434 = smul.addr %s433, 8
      %s435 = scalar_lea.vmem %s2, %s434
      %p436 = pneg %p117
      %p437 = pneg %p114
      %s438 = smul.u32 8, %s26
      %p439 = scmp.lt.s32.totalorder %s25, 1
      %s440 = scalar_select %p439, %s25, 1
      %p441 = scmp.lt.s32.totalorder %s438, 7
      %s442 = scalar_select %p441, %s438, 7
      %s443 = smul.addr %s440, 8
      %s444 = sadd.s32 %s442, %s443
      %s445 = smul.addr %s444, 8
      %s446 = scalar_lea.vmem %s3, %s445
      %p447 = pneg %p145
      %p448 = pneg %p142
      %s449 = smul.u32 8, %s26
      %p450 = scmp.lt.s32.totalorder %s25, 1
      %s451 = scalar_select %p450, %s25, 1
      %p452 = scmp.lt.s32.totalorder %s449, 7
      %s453 = scalar_select %p452, %s449, 7
      %s454 = smul.addr %s453, 2
      %s455 = smul.addr %s451, 16
      %s456 = sadd.s32 %s454, %s455
      %s457 = smul.addr %s456, 8
      %s458 = scalar_lea.vmem %s4, %s457
      %p459 = pneg %p173
      %p460 = pneg %p170
      %s461 = smul.u32 8, %s26
      %p462 = scmp.lt.s32.totalorder %s25, 1
      %s463 = scalar_select %p462, %s25, 1
      %p464 = scmp.lt.s32.totalorder %s461, 7
      %s465 = scalar_select %p464, %s461, 7
      %s466 = smul.addr %s463, 8
      %s467 = sadd.s32 %s465, %s466
      %s468 = smul.addr %s467, 8
      %s469 = scalar_lea.vmem %s5, %s468
      %p470 = pneg %p201
      %p471 = pneg %p198
      %p472 = scmp.lt.s32.totalorder %s24, 0
      %s473 = scalar_select %p472, %s24, 0
      %s474 = smul.addr %s473, 8
      %s475 = scalar_lea.vmem %s6, %s474
      %p476 = pneg %p227
      %p477 = pneg %p224
      %p478 = scmp.lt.s32.totalorder %s24, 0
      %s479 = scalar_select %p478, %s24, 0
      %s480 = scalar_lea.vmem %s7, %s479
      %p481 = pneg %p253
      %p482 = pneg %p250
      %p483 = pneg %p283
      %p484 = pneg %p280
      %s485 = smul.u32 8, %s26
      %p486 = scmp.lt.s32.totalorder %s25, 1
      %s487 = scalar_select %p486, %s25, 1
      %p488 = scmp.lt.s32.totalorder %s485, 7
      %s489 = scalar_select %p488, %s485, 7
      %p490 = scmp.lt.s32.totalorder %s24, 0
      %s491 = scalar_select %p490, %s24, 0
      %s492 = sadd.s32 %s491, %s489
      %s493 = smul.addr %s487, 8
      %s494 = sadd.s32 %s492, %s493
      %s495 = smul.addr %s494, 8
      %s496 = scalar_lea.vmem %s8, %s495
      %s497 = smul.u32 8, %s26
      %p498 = scmp.lt.s32.totalorder %s25, 1
      %s499 = scalar_select %p498, %s25, 1
      %p500 = scmp.lt.s32.totalorder %s497, 7
      %s501 = scalar_select %p500, %s497, 7
      %s502 = smul.addr %s501, 2
      %s503 = smul.addr %s499, 16
      %s504 = sadd.s32 %s502, %s503
      %s505 = smul.addr %s504, 8
      %s506 = scalar_lea.vmem %s0, %s505
      %s507 = smul.u32 8, %s26
      %s508 = smul.u32 8, %s26
      %p509 = scmp.lt.s32.totalorder %s25, 1
      %s510 = scalar_select %p509, %s25, 1
      %p511 = scmp.lt.s32.totalorder %s508, 7
      %s512 = scalar_select %p511, %s508, 7
      %s513 = smul.addr %s510, 8
      %s514 = sadd.s32 %s512, %s513
      %s515 = smul.addr %s514, 8
      %s516 = scalar_lea.vmem %s1, %s515
      %s517 = smul.u32 8, %s26
      %s518 = smul.u32 8, %s26
      %p519 = scmp.lt.s32.totalorder %s25, 1
      %s520 = scalar_select %p519, %s25, 1
      %p521 = scmp.lt.s32.totalorder %s518, 7
      %s522 = scalar_select %p521, %s518, 7
      %s523 = smul.addr %s522, 2
      %s524 = smul.addr %s520, 16
      %s525 = sadd.s32 %s523, %s524
      %s526 = smul.addr %s525, 8
      %s527 = scalar_lea.vmem %s2, %s526
      %s528 = smul.u32 8, %s26
      %s529 = smul.u32 8, %s26
      %p530 = scmp.lt.s32.totalorder %s25, 1
      %s531 = scalar_select %p530, %s25, 1
      %p532 = scmp.lt.s32.totalorder %s529, 7
      %s533 = scalar_select %p532, %s529, 7
      %s534 = smul.addr %s531, 8
      %s535 = sadd.s32 %s533, %s534
      %s536 = smul.addr %s535, 8
      %s537 = scalar_lea.vmem %s3, %s536
      %s538 = smul.u32 8, %s26
      %s539 = smul.u32 8, %s26
      %p540 = scmp.lt.s32.totalorder %s25, 1
      %s541 = scalar_select %p540, %s25, 1
      %p542 = scmp.lt.s32.totalorder %s539, 7
      %s543 = scalar_select %p542, %s539, 7
      %s544 = smul.addr %s543, 2
      %s545 = smul.addr %s541, 16
      %s546 = sadd.s32 %s544, %s545
      %s547 = smul.addr %s546, 8
      %s548 = scalar_lea.vmem %s4, %s547
      %s549 = smul.u32 8, %s26
      %s550 = smul.u32 8, %s26
      %p551 = scmp.lt.s32.totalorder %s25, 1
      %s552 = scalar_select %p551, %s25, 1
      %p553 = scmp.lt.s32.totalorder %s550, 7
      %s554 = scalar_select %p553, %s550, 7
      %s555 = smul.addr %s552, 8
      %s556 = sadd.s32 %s554, %s555
      %s557 = smul.addr %s556, 8
      %s558 = scalar_lea.vmem %s5, %s557
      %s559 = smul.u32 8, %s26
      %p560 = scmp.lt.s32.totalorder %s24, 0
      %s561 = scalar_select %p560, %s24, 0
      %s562 = smul.addr %s561, 8
      %s563 = scalar_lea.vmem %s6, %s562
      %p564 = scmp.lt.s32.totalorder %s24, 0
      %s565 = scalar_select %p564, %s24, 0
      %s566 = scalar_lea.vmem %s7, %s565
      %s567 = smul.u32 8, %s26
      %p568 = scmp.lt.s32.totalorder %s25, 1
      %s569 = scalar_select %p568, %s25, 1
      %p570 = scmp.lt.s32.totalorder %s567, 7
      %s571 = scalar_select %p570, %s567, 7
      %p572 = scmp.lt.s32.totalorder %s24, 0
      %s573 = scalar_select %p572, %s24, 0
      %s574 = sadd.s32 %s573, %s571
      %s575 = smul.addr %s569, 8
      %s576 = sadd.s32 %s574, %s575
      %s577 = smul.addr %s576, 8
      %s578 = scalar_lea.vmem %s8, %s577
      %s579 = smul.u32 8, %s26
      %v580 = vld [vmem:[%s506] sm:$0xff]
      %v581 = vld [vmem:[%s506 + $0x10] sm:$0xff]
      %v582 = vld [vmem:[%s506 + $0x20] sm:$0xff]
      %v583 = vld [vmem:[%s506 + $0x30] sm:$0xff]
      %v584 = vld [vmem:[%s506 + $0x40] sm:$0xff]
      %v585 = vld [vmem:[%s506 + $0x50] sm:$0xff]
      %v586 = vld [vmem:[%s506 + $0x60] sm:$0xff]
      %v587 = vld [vmem:[%s506 + $0x70] sm:$0xff]
      %v588 = vld [vmem:[%s516] sm:$0xff]
      %v589 = vld [vmem:[%s516 + $0x8] sm:$0xff]
      %v590 = vld [vmem:[%s516 + $0x10] sm:$0xff]
      %v591 = vld [vmem:[%s516 + $0x18] sm:$0xff]
      %v592 = vld [vmem:[%s516 + $0x20] sm:$0xff]
      %v593 = vld [vmem:[%s516 + $0x28] sm:$0xff]
      %v594 = vld [vmem:[%s516 + $0x30] sm:$0xff]
      %v595 = vld [vmem:[%s516 + $0x38] sm:$0xff]
      %v596 = vld [vmem:[%s506 + $0x1] sm:$0xff]
      %v597 = vld [vmem:[%s506 + $0x11] sm:$0xff]
      %v598 = vld [vmem:[%s506 + $0x21] sm:$0xff]
      %v599 = vld [vmem:[%s506 + $0x31] sm:$0xff]
      %v600 = vld [vmem:[%s506 + $0x41] sm:$0xff]
      %v601 = vld [vmem:[%s506 + $0x51] sm:$0xff]
      %v602 = vld [vmem:[%s506 + $0x61] sm:$0xff]
      %v603 = vld [vmem:[%s506 + $0x71] sm:$0xff]
      %v604 = vld [vmem:[%s527] sm:$0xff]
      %v605 = vld [vmem:[%s527 + $0x10] sm:$0xff]
      %v606 = vld [vmem:[%s527 + $0x20] sm:$0xff]
      %v607 = vld [vmem:[%s527 + $0x30] sm:$0xff]
      %v608 = vld [vmem:[%s527 + $0x40] sm:$0xff]
      %v609 = vld [vmem:[%s527 + $0x50] sm:$0xff]
      %v610 = vld [vmem:[%s527 + $0x60] sm:$0xff]
      %v611 = vld [vmem:[%s527 + $0x70] sm:$0xff]
      %v612 = vld [vmem:[%s537] sm:$0xff]
      %v613 = vld [vmem:[%s537 + $0x8] sm:$0xff]
      %v614 = vld [vmem:[%s537 + $0x10] sm:$0xff]
      %v615 = vld [vmem:[%s537 + $0x18] sm:$0xff]
      %v616 = vld [vmem:[%s537 + $0x20] sm:$0xff]
      %v617 = vld [vmem:[%s537 + $0x28] sm:$0xff]
      %v618 = vld [vmem:[%s537 + $0x30] sm:$0xff]
      %v619 = vld [vmem:[%s537 + $0x38] sm:$0xff]
      %v620 = vld [vmem:[%s527 + $0x1] sm:$0xff]
      %v621 = vld [vmem:[%s527 + $0x11] sm:$0xff]
      %v622 = vld [vmem:[%s527 + $0x21] sm:$0xff]
      %v623 = vld [vmem:[%s527 + $0x31] sm:$0xff]
      %v624 = vld [vmem:[%s527 + $0x41] sm:$0xff]
      %v625 = vld [vmem:[%s527 + $0x51] sm:$0xff]
      %v626 = vld [vmem:[%s527 + $0x61] sm:$0xff]
      %v627 = vld [vmem:[%s527 + $0x71] sm:$0xff]
      %v628 = vld [vmem:[%s548] sm:$0xff]
      %v629 = vld [vmem:[%s548 + $0x10] sm:$0xff]
      %v630 = vld [vmem:[%s548 + $0x20] sm:$0xff]
      %v631 = vld [vmem:[%s548 + $0x30] sm:$0xff]
      %v632 = vld [vmem:[%s548 + $0x40] sm:$0xff]
      %v633 = vld [vmem:[%s548 + $0x50] sm:$0xff]
      %v634 = vld [vmem:[%s548 + $0x60] sm:$0xff]
      %v635 = vld [vmem:[%s548 + $0x70] sm:$0xff]
      %v636 = vld [vmem:[%s558] sm:$0xff]
      %v637 = vld [vmem:[%s558 + $0x8] sm:$0xff]
      %v638 = vld [vmem:[%s558 + $0x10] sm:$0xff]
      %v639 = vld [vmem:[%s558 + $0x18] sm:$0xff]
      %v640 = vld [vmem:[%s558 + $0x20] sm:$0xff]
      %v641 = vld [vmem:[%s558 + $0x28] sm:$0xff]
      %v642 = vld [vmem:[%s558 + $0x30] sm:$0xff]
      %v643 = vld [vmem:[%s558 + $0x38] sm:$0xff]
      %v644 = vld [vmem:[%s548 + $0x1] sm:$0xff]
      %v645 = vld [vmem:[%s548 + $0x11] sm:$0xff]
      %v646 = vld [vmem:[%s548 + $0x21] sm:$0xff]
      %v647 = vld [vmem:[%s548 + $0x31] sm:$0xff]
      %v648 = vld [vmem:[%s548 + $0x41] sm:$0xff]
      %v649 = vld [vmem:[%s548 + $0x51] sm:$0xff]
      %v650 = vld [vmem:[%s548 + $0x61] sm:$0xff]
      %v651 = vld [vmem:[%s548 + $0x71] sm:$0xff]
      %v652 = vld [vmem:[%s563] sm:$0xff]
      %v653 = vld [vmem:[%s563 + $0x8] sm:$0xff]
      %v654 = vld [vmem:[%s563 + $0x10] sm:$0xff]
      %v655 = vld [vmem:[%s563 + $0x18] sm:$0xff]
      %v656 = vld [vmem:[%s563 + $0x20] sm:$0xff]
      %v657 = vld [vmem:[%s563 + $0x28] sm:$0xff]
      %v658 = vld [vmem:[%s563 + $0x30] sm:$0xff]
      %v659 = vld [vmem:[%s563 + $0x38] sm:$0xff]
      %v660 = vld [vmem:[%s563 + $0x40] sm:$0xff]
      %v661 = vld [vmem:[%s563 + $0x48] sm:$0xff]
      %v662 = vld [vmem:[%s563 + $0x50] sm:$0xff]
      %v663 = vld [vmem:[%s563 + $0x58] sm:$0xff]
      %v664 = vld [vmem:[%s563 + $0x60] sm:$0xff]
      %v665 = vld [vmem:[%s563 + $0x68] sm:$0xff]
      %v666 = vld [vmem:[%s563 + $0x70] sm:$0xff]
      %v667 = vld [vmem:[%s563 + $0x78] sm:$0xff]
      %v668 = vld [vmem:[%s563 + $0x80] sm:$0xff]
      %v669 = vld [vmem:[%s563 + $0x88] sm:$0xff]
      %v670 = vld [vmem:[%s563 + $0x90] sm:$0xff]
      %v671 = vld [vmem:[%s563 + $0x98] sm:$0xff]
      %v672 = vld [vmem:[%s563 + $0xa0] sm:$0xff]
      %v673 = vld [vmem:[%s563 + $0xa8] sm:$0xff]
      %v674 = vld [vmem:[%s563 + $0xb0] sm:$0xff]
      %v675 = vld [vmem:[%s563 + $0xb8] sm:$0xff]
      %v676 = vld [vmem:[%s563 + $0xc0] sm:$0xff]
      %v677 = vld [vmem:[%s563 + $0xc8] sm:$0xff]
      %v678 = vld [vmem:[%s563 + $0xd0] sm:$0xff]
      %v679 = vld [vmem:[%s563 + $0xd8] sm:$0xff]
      %v680 = vld [vmem:[%s563 + $0xe0] sm:$0xff]
      %v681 = vld [vmem:[%s563 + $0xe8] sm:$0xff]
      %v682 = vld [vmem:[%s563 + $0xf0] sm:$0xff]
      %v683 = vld [vmem:[%s563 + $0xf8] sm:$0xff]
      %v684 = vld [vmem:[%s563 + $0x100] sm:$0xff]
      %v685 = vld [vmem:[%s563 + $0x108] sm:$0xff]
      %v686 = vld [vmem:[%s563 + $0x110] sm:$0xff]
      %v687 = vld [vmem:[%s563 + $0x118] sm:$0xff]
      %v688 = vld [vmem:[%s563 + $0x120] sm:$0xff]
      %v689 = vld [vmem:[%s563 + $0x128] sm:$0xff]
      %v690 = vld [vmem:[%s563 + $0x130] sm:$0xff]
      %v691 = vld [vmem:[%s563 + $0x138] sm:$0xff]
      %v692 = vld [vmem:[%s563 + $0x140] sm:$0xff]
      %v693 = vld [vmem:[%s563 + $0x148] sm:$0xff]
      %v694 = vld [vmem:[%s563 + $0x150] sm:$0xff]
      %v695 = vld [vmem:[%s563 + $0x158] sm:$0xff]
      %v696 = vld [vmem:[%s563 + $0x160] sm:$0xff]
      %v697 = vld [vmem:[%s563 + $0x168] sm:$0xff]
      %v698 = vld [vmem:[%s563 + $0x170] sm:$0xff]
      %v699 = vld [vmem:[%s563 + $0x178] sm:$0xff]
      %v700 = vld [vmem:[%s563 + $0x180] sm:$0xff]
      %v701 = vld [vmem:[%s563 + $0x188] sm:$0xff]
      %v702 = vld [vmem:[%s563 + $0x190] sm:$0xff]
      %v703 = vld [vmem:[%s563 + $0x198] sm:$0xff]
      %v704 = vld [vmem:[%s563 + $0x1a0] sm:$0xff]
      %v705 = vld [vmem:[%s563 + $0x1a8] sm:$0xff]
      %v706 = vld [vmem:[%s563 + $0x1b0] sm:$0xff]
      %v707 = vld [vmem:[%s563 + $0x1b8] sm:$0xff]
      %v708 = vld [vmem:[%s563 + $0x1c0] sm:$0xff]
      %v709 = vld [vmem:[%s563 + $0x1c8] sm:$0xff]
      %v710 = vld [vmem:[%s563 + $0x1d0] sm:$0xff]
      %v711 = vld [vmem:[%s563 + $0x1d8] sm:$0xff]
      %v712 = vld [vmem:[%s563 + $0x1e0] sm:$0xff]
      %v713 = vld [vmem:[%s563 + $0x1e8] sm:$0xff]
      %v714 = vld [vmem:[%s563 + $0x1f0] sm:$0xff]
      %v715 = vld [vmem:[%s563 + $0x1f8] sm:$0xff]
      %v716 = vld [vmem:[%s563 + $0x200] sm:$0xff]
      %v717 = vld [vmem:[%s563 + $0x208] sm:$0xff]
      %v718 = vld [vmem:[%s563 + $0x210] sm:$0xff]
      %v719 = vld [vmem:[%s563 + $0x218] sm:$0xff]
      %v720 = vld [vmem:[%s563 + $0x220] sm:$0xff]
      %v721 = vld [vmem:[%s563 + $0x228] sm:$0xff]
      %v722 = vld [vmem:[%s563 + $0x230] sm:$0xff]
      %v723 = vld [vmem:[%s563 + $0x238] sm:$0xff]
      %v724 = vld [vmem:[%s563 + $0x240] sm:$0xff]
      %v725 = vld [vmem:[%s563 + $0x248] sm:$0xff]
      %v726 = vld [vmem:[%s563 + $0x250] sm:$0xff]
      %v727 = vld [vmem:[%s563 + $0x258] sm:$0xff]
      %v728 = vld [vmem:[%s563 + $0x260] sm:$0xff]
      %v729 = vld [vmem:[%s563 + $0x268] sm:$0xff]
      %v730 = vld [vmem:[%s563 + $0x270] sm:$0xff]
      %v731 = vld [vmem:[%s563 + $0x278] sm:$0xff]
      %v732 = vld [vmem:[%s563 + $0x280] sm:$0xff]
      %v733 = vld [vmem:[%s563 + $0x288] sm:$0xff]
      %v734 = vld [vmem:[%s563 + $0x290] sm:$0xff]
      %v735 = vld [vmem:[%s563 + $0x298] sm:$0xff]
      %v736 = vld [vmem:[%s563 + $0x2a0] sm:$0xff]
      %v737 = vld [vmem:[%s563 + $0x2a8] sm:$0xff]
      %v738 = vld [vmem:[%s563 + $0x2b0] sm:$0xff]
      %v739 = vld [vmem:[%s563 + $0x2b8] sm:$0xff]
      %v740 = vld [vmem:[%s563 + $0x2c0] sm:$0xff]
      %v741 = vld [vmem:[%s563 + $0x2c8] sm:$0xff]
      %v742 = vld [vmem:[%s563 + $0x2d0] sm:$0xff]
      %v743 = vld [vmem:[%s563 + $0x2d8] sm:$0xff]
      %v744 = vld [vmem:[%s563 + $0x2e0] sm:$0xff]
      %v745 = vld [vmem:[%s563 + $0x2e8] sm:$0xff]
      %v746 = vld [vmem:[%s563 + $0x2f0] sm:$0xff]
      %v747 = vld [vmem:[%s563 + $0x2f8] sm:$0xff]
      %v748 = vld [vmem:[%s563 + $0x300] sm:$0xff]
      %v749 = vld [vmem:[%s563 + $0x308] sm:$0xff]
      %v750 = vld [vmem:[%s563 + $0x310] sm:$0xff]
      %v751 = vld [vmem:[%s563 + $0x318] sm:$0xff]
      %v752 = vld [vmem:[%s563 + $0x320] sm:$0xff]
      %v753 = vld [vmem:[%s563 + $0x328] sm:$0xff]
      %v754 = vld [vmem:[%s563 + $0x330] sm:$0xff]
      %v755 = vld [vmem:[%s563 + $0x338] sm:$0xff]
      %v756 = vld [vmem:[%s563 + $0x340] sm:$0xff]
      %v757 = vld [vmem:[%s563 + $0x348] sm:$0xff]
      %v758 = vld [vmem:[%s563 + $0x350] sm:$0xff]
      %v759 = vld [vmem:[%s563 + $0x358] sm:$0xff]
      %v760 = vld [vmem:[%s563 + $0x360] sm:$0xff]
      %v761 = vld [vmem:[%s563 + $0x368] sm:$0xff]
      %v762 = vld [vmem:[%s563 + $0x370] sm:$0xff]
      %v763 = vld [vmem:[%s563 + $0x378] sm:$0xff]
      %v764 = vld [vmem:[%s563 + $0x380] sm:$0xff]
      %v765 = vld [vmem:[%s563 + $0x388] sm:$0xff]
      %v766 = vld [vmem:[%s563 + $0x390] sm:$0xff]
      %v767 = vld [vmem:[%s563 + $0x398] sm:$0xff]
      %v768 = vld [vmem:[%s563 + $0x3a0] sm:$0xff]
      %v769 = vld [vmem:[%s563 + $0x3a8] sm:$0xff]
      %v770 = vld [vmem:[%s563 + $0x3b0] sm:$0xff]
      %v771 = vld [vmem:[%s563 + $0x3b8] sm:$0xff]
      %v772 = vld [vmem:[%s563 + $0x3c0] sm:$0xff]
      %v773 = vld [vmem:[%s563 + $0x3c8] sm:$0xff]
      %v774 = vld [vmem:[%s563 + $0x3d0] sm:$0xff]
      %v775 = vld [vmem:[%s563 + $0x3d8] sm:$0xff]
      %v776 = vld [vmem:[%s563 + $0x3e0] sm:$0xff]
      %v777 = vld [vmem:[%s563 + $0x3e8] sm:$0xff]
      %v778 = vld [vmem:[%s563 + $0x3f0] sm:$0xff]
      %v779 = vld [vmem:[%s563 + $0x3f8] sm:$0xff]
      %v780 = vld [vmem:[%s563 + $0x400] sm:$0xff]
      %v781 = vld [vmem:[%s563 + $0x408] sm:$0xff]
      %v782 = vld [vmem:[%s563 + $0x410] sm:$0xff]
      %v783 = vld [vmem:[%s563 + $0x418] sm:$0xff]
      %v784 = vld [vmem:[%s563 + $0x420] sm:$0xff]
      %v785 = vld [vmem:[%s563 + $0x428] sm:$0xff]
      %v786 = vld [vmem:[%s563 + $0x430] sm:$0xff]
      %v787 = vld [vmem:[%s563 + $0x438] sm:$0xff]
      %v788 = vld [vmem:[%s563 + $0x440] sm:$0xff]
      %v789 = vld [vmem:[%s563 + $0x448] sm:$0xff]
      %v790 = vld [vmem:[%s563 + $0x450] sm:$0xff]
      %v791 = vld [vmem:[%s563 + $0x458] sm:$0xff]
      %v792 = vld [vmem:[%s563 + $0x460] sm:$0xff]
      %v793 = vld [vmem:[%s563 + $0x468] sm:$0xff]
      %v794 = vld [vmem:[%s563 + $0x470] sm:$0xff]
      %v795 = vld [vmem:[%s563 + $0x478] sm:$0xff]
      %v796 = vld [vmem:[%s566] sm:$0x1]
      %v798 = vlaneseq
      %v799 = vshrl.u32 %v798, 7
      %v800 = vsub.s32 0, %v799
      %v801 = vrot.slane %v796, %v800
      %803 = vmatprep.subr.mxu0 0.0
      %804 = vmatpush1.msra.mxu0 %v667
      %805 = vmatprep.subr.mxu0 0.0
      %806 = vmatpush1.msra.mxu0 %v666
      %807 = vmatprep.subr.mxu0 0.0
      %808 = vmatpush1.msra.mxu0 %v665
      %809 = vmatprep.subr.mxu0 0.0
      %810 = vmatpush1.msra.mxu0 %v664
      %811 = vmatprep.subr.mxu0 0.0
      %812 = vmatpush1.msra.mxu0 %v663
      %813 = vmatprep.subr.mxu0 0.0
      %814 = vmatpush1.msra.mxu0 %v662
      %815 = vmatprep.subr.mxu0 0.0
      %816 = vmatpush1.msra.mxu0 %v661
      %817 = vmatprep.subr.mxu0 0.0
      %818 = vmatpush1.msra.mxu0 %v660
      %819 = vmatprep.subr.mxu0 0.0
      %820 = vmatpush1.msra.mxu0 %v659
      %821 = vmatprep.subr.mxu0 0.0
      %822 = vmatpush1.msra.mxu0 %v658
      %823 = vmatprep.subr.mxu0 0.0
      %824 = vmatpush1.msra.mxu0 %v657
      %825 = vmatprep.subr.mxu0 0.0
      %826 = vmatpush1.msra.mxu0 %v656
      %827 = vmatprep.subr.mxu0 0.0
      %828 = vmatpush1.msra.mxu0 %v655
      %829 = vmatprep.subr.mxu0 0.0
      %830 = vmatpush1.msra.mxu0 %v654
      %831 = vmatprep.subr.mxu0 0.0
      %832 = vmatpush1.msra.mxu0 %v653
      %833 = vmatprep.subr.mxu0 0.0
      %834 = vmatpush1.msra.mxu0 %v652
      %835 = vmatprep.subr.mxu0 0.0
      %836 = vmatpush2.msra.mxu0 %v683
      %837 = vmatprep.subr.mxu0 0.0
      %838 = vmatpush2.msra.mxu0 %v682
      %839 = vmatprep.subr.mxu0 0.0
      %840 = vmatpush2.msra.mxu0 %v681
      %841 = vmatprep.subr.mxu0 0.0
      %842 = vmatpush2.msra.mxu0 %v680
      %843 = vmatprep.subr.mxu0 0.0
      %844 = vmatpush2.msra.mxu0 %v679
      %845 = vmatprep.subr.mxu0 0.0
      %846 = vmatpush2.msra.mxu0 %v678
      %847 = vmatprep.subr.mxu0 0.0
      %848 = vmatpush2.msra.mxu0 %v677
      %849 = vmatprep.subr.mxu0 0.0
      %850 = vmatpush2.msra.mxu0 %v676
      %851 = vmatprep.subr.mxu0 0.0
      %852 = vmatpush2.msra.mxu0 %v675
      %853 = vmatprep.subr.mxu0 0.0
      %854 = vmatpush2.msra.mxu0 %v674
      %855 = vmatprep.subr.mxu0 0.0
      %856 = vmatpush2.msra.mxu0 %v673
      %857 = vmatprep.subr.mxu0 0.0
      %858 = vmatpush2.msra.mxu0 %v672
      %859 = vmatprep.subr.mxu0 0.0
      %860 = vmatpush2.msra.mxu0 %v671
      %861 = vmatprep.subr.mxu0 0.0
      %862 = vmatpush2.msra.mxu0 %v670
      %863 = vmatprep.subr.mxu0 0.0
      %864 = vmatpush2.msra.mxu0 %v669
      %865 = vmatprep.subr.mxu0 0.0
      %866 = vmatpush2.msra.mxu0 %v668
      %867 = vmatprep.mubr.f32.mxu0 %v588
      %868 = vmatmul.mubr.f32.gmra.mxu0 %v580
      %v869 = vpop.f32.mrf.mxu0
      %v870 = vadd.f32 %v801, %v869
      %v871 = vpop.f32.mrf.mxu0
      %872 = vmatprep.mubr.f32.mxu0 %v589
      %873 = vmatmul.mubr.f32.gmra.mxu0 %v581
      %v874 = vpop.f32.mrf.mxu0
      %v875 = vadd.f32 %v801, %v874
      %v876 = vpop.f32.mrf.mxu0
      %877 = vmatprep.mubr.f32.mxu0 %v590
      %878 = vmatmul.mubr.f32.gmra.mxu0 %v582
      %v879 = vpop.f32.mrf.mxu0
      %v880 = vadd.f32 %v801, %v879
      %v881 = vpop.f32.mrf.mxu0
      %882 = vmatprep.mubr.f32.mxu0 %v591
      %883 = vmatmul.mubr.f32.gmra.mxu0 %v583
      %v884 = vpop.f32.mrf.mxu0
      %v885 = vadd.f32 %v801, %v884
      %v886 = vpop.f32.mrf.mxu0
      %887 = vmatprep.mubr.f32.mxu0 %v592
      %888 = vmatmul.mubr.f32.gmra.mxu0 %v584
      %v889 = vpop.f32.mrf.mxu0
      %v890 = vadd.f32 %v801, %v889
      %v891 = vpop.f32.mrf.mxu0
      %892 = vmatprep.mubr.f32.mxu0 %v593
      %893 = vmatmul.mubr.f32.gmra.mxu0 %v585
      %v894 = vpop.f32.mrf.mxu0
      %v895 = vadd.f32 %v801, %v894
      %v896 = vpop.f32.mrf.mxu0
      %897 = vmatprep.mubr.f32.mxu0 %v594
      %898 = vmatmul.mubr.f32.gmra.mxu0 %v586
      %v899 = vpop.f32.mrf.mxu0
      %v900 = vadd.f32 %v801, %v899
      %v901 = vpop.f32.mrf.mxu0
      %902 = vmatprep.mubr.f32.mxu0 %v595
      %903 = vmatmul.mubr.f32.gmra.mxu0 %v587
      %v904 = vpop.f32.mrf.mxu0
      %v905 = vadd.f32 %v801, %v904
      %v906 = vpop.f32.mrf.mxu0
      %907 = vdwg.mxu0
      %908 = vmatprep.subr.mxu0 0.0
      %909 = vmatpush1.msra.mxu0 %v699
      %910 = vmatprep.subr.mxu0 0.0
      %911 = vmatpush1.msra.mxu0 %v698
      %912 = vmatprep.subr.mxu0 0.0
      %913 = vmatpush1.msra.mxu0 %v697
      %914 = vmatprep.subr.mxu0 0.0
      %915 = vmatpush1.msra.mxu0 %v696
      %916 = vmatprep.subr.mxu0 0.0
      %917 = vmatpush1.msra.mxu0 %v695
      %918 = vmatprep.subr.mxu0 0.0
      %919 = vmatpush1.msra.mxu0 %v694
      %920 = vmatprep.subr.mxu0 0.0
      %921 = vmatpush1.msra.mxu0 %v693
      %922 = vmatprep.subr.mxu0 0.0
      %923 = vmatpush1.msra.mxu0 %v692
      %924 = vmatprep.subr.mxu0 0.0
      %925 = vmatpush1.msra.mxu0 %v691
      %926 = vmatprep.subr.mxu0 0.0
      %927 = vmatpush1.msra.mxu0 %v690
      %928 = vmatprep.subr.mxu0 0.0
      %929 = vmatpush1.msra.mxu0 %v689
      %930 = vmatprep.subr.mxu0 0.0
      %931 = vmatpush1.msra.mxu0 %v688
      %932 = vmatprep.subr.mxu0 0.0
      %933 = vmatpush1.msra.mxu0 %v687
      %934 = vmatprep.subr.mxu0 0.0
      %935 = vmatpush1.msra.mxu0 %v686
      %936 = vmatprep.subr.mxu0 0.0
      %937 = vmatpush1.msra.mxu0 %v685
      %938 = vmatprep.subr.mxu0 0.0
      %939 = vmatpush1.msra.mxu0 %v684
      %940 = vmatprep.subr.mxu0 0.0
      %941 = vmatpush2.msra.mxu0 %v715
      %942 = vmatprep.subr.mxu0 0.0
      %943 = vmatpush2.msra.mxu0 %v714
      %944 = vmatprep.subr.mxu0 0.0
      %945 = vmatpush2.msra.mxu0 %v713
      %946 = vmatprep.subr.mxu0 0.0
      %947 = vmatpush2.msra.mxu0 %v712
      %948 = vmatprep.subr.mxu0 0.0
      %949 = vmatpush2.msra.mxu0 %v711
      %950 = vmatprep.subr.mxu0 0.0
      %951 = vmatpush2.msra.mxu0 %v710
      %952 = vmatprep.subr.mxu0 0.0
      %953 = vmatpush2.msra.mxu0 %v709
      %954 = vmatprep.subr.mxu0 0.0
      %955 = vmatpush2.msra.mxu0 %v708
      %956 = vmatprep.subr.mxu0 0.0
      %957 = vmatpush2.msra.mxu0 %v707
      %958 = vmatprep.subr.mxu0 0.0
      %959 = vmatpush2.msra.mxu0 %v706
      %960 = vmatprep.subr.mxu0 0.0
      %961 = vmatpush2.msra.mxu0 %v705
      %962 = vmatprep.subr.mxu0 0.0
      %963 = vmatpush2.msra.mxu0 %v704
      %964 = vmatprep.subr.mxu0 0.0
      %965 = vmatpush2.msra.mxu0 %v703
      %966 = vmatprep.subr.mxu0 0.0
      %967 = vmatpush2.msra.mxu0 %v702
      %968 = vmatprep.subr.mxu0 0.0
      %969 = vmatpush2.msra.mxu0 %v701
      %970 = vmatprep.subr.mxu0 0.0
      %971 = vmatpush2.msra.mxu0 %v700
      %972 = vmatprep.mubr.f32.mxu0 %v604
      %973 = vmatmul.mubr.f32.gmra.mxu0 %v596
      %v974 = vpop.f32.mrf.mxu0
      %v975 = vadd.f32 %v870, %v974
      %v976 = vpop.f32.mrf.mxu0
      %977 = vmatprep.mubr.f32.mxu0 %v605
      %978 = vmatmul.mubr.f32.gmra.mxu0 %v597
      %v979 = vpop.f32.mrf.mxu0
      %v980 = vadd.f32 %v875, %v979
      %v981 = vpop.f32.mrf.mxu0
      %982 = vmatprep.mubr.f32.mxu0 %v606
      %983 = vmatmul.mubr.f32.gmra.mxu0 %v598
      %v984 = vpop.f32.mrf.mxu0
      %v985 = vadd.f32 %v880, %v984
      %v986 = vpop.f32.mrf.mxu0
      %987 = vmatprep.mubr.f32.mxu0 %v607
      %988 = vmatmul.mubr.f32.gmra.mxu0 %v599
      %v989 = vpop.f32.mrf.mxu0
      %v990 = vadd.f32 %v885, %v989
      %v991 = vpop.f32.mrf.mxu0
      %992 = vmatprep.mubr.f32.mxu0 %v608
      %993 = vmatmul.mubr.f32.gmra.mxu0 %v600
      %v994 = vpop.f32.mrf.mxu0
      %v995 = vadd.f32 %v890, %v994
      %v996 = vpop.f32.mrf.mxu0
      %997 = vmatprep.mubr.f32.mxu0 %v609
      %998 = vmatmul.mubr.f32.gmra.mxu0 %v601
      %v999 = vpop.f32.mrf.mxu0
      %v1000 = vadd.f32 %v895, %v999
      %v1001 = vpop.f32.mrf.mxu0
      %1002 = vmatprep.mubr.f32.mxu0 %v610
      %1003 = vmatmul.mubr.f32.gmra.mxu0 %v602
      %v1004 = vpop.f32.mrf.mxu0
      %v1005 = vadd.f32 %v900, %v1004
      %v1006 = vpop.f32.mrf.mxu0
      %1007 = vmatprep.mubr.f32.mxu0 %v611
      %1008 = vmatmul.mubr.f32.gmra.mxu0 %v603
      %v1009 = vpop.f32.mrf.mxu0
      %v1010 = vadd.f32 %v905, %v1009
      %v1011 = vpop.f32.mrf.mxu0
      %1012 = vdwg.mxu0
      %1013 = vmatprep.subr.mxu0 0.0
      %1014 = vmatpush1.msra.mxu0 %v731
      %1015 = vmatprep.subr.mxu0 0.0
      %1016 = vmatpush1.msra.mxu0 %v730
      %1017 = vmatprep.subr.mxu0 0.0
      %1018 = vmatpush1.msra.mxu0 %v729
      %1019 = vmatprep.subr.mxu0 0.0
      %1020 = vmatpush1.msra.mxu0 %v728
      %1021 = vmatprep.subr.mxu0 0.0
      %1022 = vmatpush1.msra.mxu0 %v727
      %1023 = vmatprep.subr.mxu0 0.0
      %1024 = vmatpush1.msra.mxu0 %v726
      %1025 = vmatprep.subr.mxu0 0.0
      %1026 = vmatpush1.msra.mxu0 %v725
      %1027 = vmatprep.subr.mxu0 0.0
      %1028 = vmatpush1.msra.mxu0 %v724
      %1029 = vmatprep.subr.mxu0 0.0
      %1030 = vmatpush1.msra.mxu0 %v723
      %1031 = vmatprep.subr.mxu0 0.0
      %1032 = vmatpush1.msra.mxu0 %v722
      %1033 = vmatprep.subr.mxu0 0.0
      %1034 = vmatpush1.msra.mxu0 %v721
      %1035 = vmatprep.subr.mxu0 0.0
      %1036 = vmatpush1.msra.mxu0 %v720
      %1037 = vmatprep.subr.mxu0 0.0
      %1038 = vmatpush1.msra.mxu0 %v719
      %1039 = vmatprep.subr.mxu0 0.0
      %1040 = vmatpush1.msra.mxu0 %v718
      %1041 = vmatprep.subr.mxu0 0.0
      %1042 = vmatpush1.msra.mxu0 %v717
      %1043 = vmatprep.subr.mxu0 0.0
      %1044 = vmatpush1.msra.mxu0 %v716
      %1045 = vmatprep.subr.mxu0 0.0
      %1046 = vmatpush2.msra.mxu0 %v747
      %1047 = vmatprep.subr.mxu0 0.0
      %1048 = vmatpush2.msra.mxu0 %v746
      %1049 = vmatprep.subr.mxu0 0.0
      %1050 = vmatpush2.msra.mxu0 %v745
      %1051 = vmatprep.subr.mxu0 0.0
      %1052 = vmatpush2.msra.mxu0 %v744
      %1053 = vmatprep.subr.mxu0 0.0
      %1054 = vmatpush2.msra.mxu0 %v743
      %1055 = vmatprep.subr.mxu0 0.0
      %1056 = vmatpush2.msra.mxu0 %v742
      %1057 = vmatprep.subr.mxu0 0.0
      %1058 = vmatpush2.msra.mxu0 %v741
      %1059 = vmatprep.subr.mxu0 0.0
      %1060 = vmatpush2.msra.mxu0 %v740
      %1061 = vmatprep.subr.mxu0 0.0
      %1062 = vmatpush2.msra.mxu0 %v739
      %1063 = vmatprep.subr.mxu0 0.0
      %1064 = vmatpush2.msra.mxu0 %v738
      %1065 = vmatprep.subr.mxu0 0.0
      %1066 = vmatpush2.msra.mxu0 %v737
      %1067 = vmatprep.subr.mxu0 0.0
      %1068 = vmatpush2.msra.mxu0 %v736
      %1069 = vmatprep.subr.mxu0 0.0
      %1070 = vmatpush2.msra.mxu0 %v735
      %1071 = vmatprep.subr.mxu0 0.0
      %1072 = vmatpush2.msra.mxu0 %v734
      %1073 = vmatprep.subr.mxu0 0.0
      %1074 = vmatpush2.msra.mxu0 %v733
      %1075 = vmatprep.subr.mxu0 0.0
      %1076 = vmatpush2.msra.mxu0 %v732
      %1077 = vmatprep.mubr.f32.mxu0 %v620
      %1078 = vmatmul.mubr.f32.gmra.mxu0 %v612
      %v1079 = vpop.f32.mrf.mxu0
      %v1080 = vadd.f32 %v975, %v1079
      %v1081 = vpop.f32.mrf.mxu0
      %1082 = vmatprep.mubr.f32.mxu0 %v621
      %1083 = vmatmul.mubr.f32.gmra.mxu0 %v613
      %v1084 = vpop.f32.mrf.mxu0
      %v1085 = vadd.f32 %v980, %v1084
      %v1086 = vpop.f32.mrf.mxu0
      %1087 = vmatprep.mubr.f32.mxu0 %v622
      %1088 = vmatmul.mubr.f32.gmra.mxu0 %v614
      %v1089 = vpop.f32.mrf.mxu0
      %v1090 = vadd.f32 %v985, %v1089
      %v1091 = vpop.f32.mrf.mxu0
      %1092 = vmatprep.mubr.f32.mxu0 %v623
      %1093 = vmatmul.mubr.f32.gmra.mxu0 %v615
      %v1094 = vpop.f32.mrf.mxu0
      %v1095 = vadd.f32 %v990, %v1094
      %v1096 = vpop.f32.mrf.mxu0
      %1097 = vmatprep.mubr.f32.mxu0 %v624
      %1098 = vmatmul.mubr.f32.gmra.mxu0 %v616
      %v1099 = vpop.f32.mrf.mxu0
      %v1100 = vadd.f32 %v995, %v1099
      %v1101 = vpop.f32.mrf.mxu0
      %1102 = vmatprep.mubr.f32.mxu0 %v625
      %1103 = vmatmul.mubr.f32.gmra.mxu0 %v617
      %v1104 = vpop.f32.mrf.mxu0
      %v1105 = vadd.f32 %v1000, %v1104
      %v1106 = vpop.f32.mrf.mxu0
      %1107 = vmatprep.mubr.f32.mxu0 %v626
      %1108 = vmatmul.mubr.f32.gmra.mxu0 %v618
      %v1109 = vpop.f32.mrf.mxu0
      %v1110 = vadd.f32 %v1005, %v1109
      %v1111 = vpop.f32.mrf.mxu0
      %1112 = vmatprep.mubr.f32.mxu0 %v627
      %1113 = vmatmul.mubr.f32.gmra.mxu0 %v619
      %v1114 = vpop.f32.mrf.mxu0
      %v1115 = vadd.f32 %v1010, %v1114
      %v1116 = vpop.f32.mrf.mxu0
      %1117 = vdwg.mxu0
      %1118 = vmatprep.subr.mxu0 0.0
      %1119 = vmatpush1.msra.mxu0 %v763
      %1120 = vmatprep.subr.mxu0 0.0
      %1121 = vmatpush1.msra.mxu0 %v762
      %1122 = vmatprep.subr.mxu0 0.0
      %1123 = vmatpush1.msra.mxu0 %v761
      %1124 = vmatprep.subr.mxu0 0.0
      %1125 = vmatpush1.msra.mxu0 %v760
      %1126 = vmatprep.subr.mxu0 0.0
      %1127 = vmatpush1.msra.mxu0 %v759
      %1128 = vmatprep.subr.mxu0 0.0
      %1129 = vmatpush1.msra.mxu0 %v758
      %1130 = vmatprep.subr.mxu0 0.0
      %1131 = vmatpush1.msra.mxu0 %v757
      %1132 = vmatprep.subr.mxu0 0.0
      %1133 = vmatpush1.msra.mxu0 %v756
      %1134 = vmatprep.subr.mxu0 0.0
      %1135 = vmatpush1.msra.mxu0 %v755
      %1136 = vmatprep.subr.mxu0 0.0
      %1137 = vmatpush1.msra.mxu0 %v754
      %1138 = vmatprep.subr.mxu0 0.0
      %1139 = vmatpush1.msra.mxu0 %v753
      %1140 = vmatprep.subr.mxu0 0.0
      %1141 = vmatpush1.msra.mxu0 %v752
      %1142 = vmatprep.subr.mxu0 0.0
      %1143 = vmatpush1.msra.mxu0 %v751
      %1144 = vmatprep.subr.mxu0 0.0
      %1145 = vmatpush1.msra.mxu0 %v750
      %1146 = vmatprep.subr.mxu0 0.0
      %1147 = vmatpush1.msra.mxu0 %v749
      %1148 = vmatprep.subr.mxu0 0.0
      %1149 = vmatpush1.msra.mxu0 %v748
      %1150 = vmatprep.subr.mxu0 0.0
      %1151 = vmatpush2.msra.mxu0 %v779
      %1152 = vmatprep.subr.mxu0 0.0
      %1153 = vmatpush2.msra.mxu0 %v778
      %1154 = vmatprep.subr.mxu0 0.0
      %1155 = vmatpush2.msra.mxu0 %v777
      %1156 = vmatprep.subr.mxu0 0.0
      %1157 = vmatpush2.msra.mxu0 %v776
      %1158 = vmatprep.subr.mxu0 0.0
      %1159 = vmatpush2.msra.mxu0 %v775
      %1160 = vmatprep.subr.mxu0 0.0
      %1161 = vmatpush2.msra.mxu0 %v774
      %1162 = vmatprep.subr.mxu0 0.0
      %1163 = vmatpush2.msra.mxu0 %v773
      %1164 = vmatprep.subr.mxu0 0.0
      %1165 = vmatpush2.msra.mxu0 %v772
      %1166 = vmatprep.subr.mxu0 0.0
      %1167 = vmatpush2.msra.mxu0 %v771
      %1168 = vmatprep.subr.mxu0 0.0
      %1169 = vmatpush2.msra.mxu0 %v770
      %1170 = vmatprep.subr.mxu0 0.0
      %1171 = vmatpush2.msra.mxu0 %v769
      %1172 = vmatprep.subr.mxu0 0.0
      %1173 = vmatpush2.msra.mxu0 %v768
      %1174 = vmatprep.subr.mxu0 0.0
      %1175 = vmatpush2.msra.mxu0 %v767
      %1176 = vmatprep.subr.mxu0 0.0
      %1177 = vmatpush2.msra.mxu0 %v766
      %1178 = vmatprep.subr.mxu0 0.0
      %1179 = vmatpush2.msra.mxu0 %v765
      %1180 = vmatprep.subr.mxu0 0.0
      %1181 = vmatpush2.msra.mxu0 %v764
      %1182 = vmatprep.mubr.f32.mxu0 %v636
      %1183 = vmatmul.mubr.f32.gmra.mxu0 %v628
      %v1184 = vpop.f32.mrf.mxu0
      %v1185 = vadd.f32 %v1080, %v1184
      %v1186 = vpop.f32.mrf.mxu0
      %1187 = vmatprep.mubr.f32.mxu0 %v637
      %1188 = vmatmul.mubr.f32.gmra.mxu0 %v629
      %v1189 = vpop.f32.mrf.mxu0
      %v1190 = vadd.f32 %v1085, %v1189
      %v1191 = vpop.f32.mrf.mxu0
      %1192 = vmatprep.mubr.f32.mxu0 %v638
      %1193 = vmatmul.mubr.f32.gmra.mxu0 %v630
      %v1194 = vpop.f32.mrf.mxu0
      %v1195 = vadd.f32 %v1090, %v1194
      %v1196 = vpop.f32.mrf.mxu0
      %1197 = vmatprep.mubr.f32.mxu0 %v639
      %1198 = vmatmul.mubr.f32.gmra.mxu0 %v631
      %v1199 = vpop.f32.mrf.mxu0
      %v1200 = vadd.f32 %v1095, %v1199
      %v1201 = vpop.f32.mrf.mxu0
      %1202 = vmatprep.mubr.f32.mxu0 %v640
      %1203 = vmatmul.mubr.f32.gmra.mxu0 %v632
      %v1204 = vpop.f32.mrf.mxu0
      %v1205 = vadd.f32 %v1100, %v1204
      %v1206 = vpop.f32.mrf.mxu0
      %1207 = vmatprep.mubr.f32.mxu0 %v641
      %1208 = vmatmul.mubr.f32.gmra.mxu0 %v633
      %v1209 = vpop.f32.mrf.mxu0
      %v1210 = vadd.f32 %v1105, %v1209
      %v1211 = vpop.f32.mrf.mxu0
      %1212 = vmatprep.mubr.f32.mxu0 %v642
      %1213 = vmatmul.mubr.f32.gmra.mxu0 %v634
      %v1214 = vpop.f32.mrf.mxu0
      %v1215 = vadd.f32 %v1110, %v1214
      %v1216 = vpop.f32.mrf.mxu0
      %1217 = vmatprep.mubr.f32.mxu0 %v643
      %1218 = vmatmul.mubr.f32.gmra.mxu0 %v635
      %v1219 = vpop.f32.mrf.mxu0
      %v1220 = vadd.f32 %v1115, %v1219
      %v1221 = vpop.f32.mrf.mxu0
      %1222 = vdwg.mxu0
      %1223 = vmatprep.subr.mxu0 0.0
      %1224 = vmatpush1.msra.mxu0 %v795
      %1225 = vmatprep.subr.mxu0 0.0
      %1226 = vmatpush1.msra.mxu0 %v794
      %1227 = vmatprep.subr.mxu0 0.0
      %1228 = vmatpush1.msra.mxu0 %v793
      %1229 = vmatprep.subr.mxu0 0.0
      %1230 = vmatpush1.msra.mxu0 %v792
      %1231 = vmatprep.subr.mxu0 0.0
      %1232 = vmatpush1.msra.mxu0 %v791
      %1233 = vmatprep.subr.mxu0 0.0
      %1234 = vmatpush1.msra.mxu0 %v790
      %1235 = vmatprep.subr.mxu0 0.0
      %1236 = vmatpush1.msra.mxu0 %v789
      %1237 = vmatprep.subr.mxu0 0.0
      %1238 = vmatpush1.msra.mxu0 %v788
      %1239 = vmatprep.subr.mxu0 0.0
      %1240 = vmatpush1.msra.mxu0 %v787
      %1241 = vmatprep.subr.mxu0 0.0
      %1242 = vmatpush1.msra.mxu0 %v786
      %1243 = vmatprep.subr.mxu0 0.0
      %1244 = vmatpush1.msra.mxu0 %v785
      %1245 = vmatprep.subr.mxu0 0.0
      %1246 = vmatpush1.msra.mxu0 %v784
      %1247 = vmatprep.subr.mxu0 0.0
      %1248 = vmatpush1.msra.mxu0 %v783
      %1249 = vmatprep.subr.mxu0 0.0
      %1250 = vmatpush1.msra.mxu0 %v782
      %1251 = vmatprep.subr.mxu0 0.0
      %1252 = vmatpush1.msra.mxu0 %v781
      %1253 = vmatprep.subr.mxu0 0.0
      %1254 = vmatpush1.msra.mxu0 %v780
      %1255 = vmatprep.subr.mxu0 0.0
      %1256 = vmatpush2.msra.mxu0 0.0
      %1257 = vmatprep.subr.mxu0 0.0
      %1258 = vmatpush2.msra.mxu0 0.0
      %1259 = vmatprep.subr.mxu0 0.0
      %1260 = vmatpush2.msra.mxu0 0.0
      %1261 = vmatprep.subr.mxu0 0.0
      %1262 = vmatpush2.msra.mxu0 0.0
      %1263 = vmatprep.subr.mxu0 0.0
      %1264 = vmatpush2.msra.mxu0 0.0
      %1265 = vmatprep.subr.mxu0 0.0
      %1266 = vmatpush2.msra.mxu0 0.0
      %1267 = vmatprep.subr.mxu0 0.0
      %1268 = vmatpush2.msra.mxu0 0.0
      %1269 = vmatprep.subr.mxu0 0.0
      %1270 = vmatpush2.msra.mxu0 0.0
      %1271 = vmatprep.subr.mxu0 0.0
      %1272 = vmatpush2.msra.mxu0 0.0
      %1273 = vmatprep.subr.mxu0 0.0
      %1274 = vmatpush2.msra.mxu0 0.0
      %1275 = vmatprep.subr.mxu0 0.0
      %1276 = vmatpush2.msra.mxu0 0.0
      %1277 = vmatprep.subr.mxu0 0.0
      %1278 = vmatpush2.msra.mxu0 0.0
      %1279 = vmatprep.subr.mxu0 0.0
      %1280 = vmatpush2.msra.mxu0 0.0
      %1281 = vmatprep.subr.mxu0 0.0
      %1282 = vmatpush2.msra.mxu0 0.0
      %1283 = vmatprep.subr.mxu0 0.0
      %1284 = vmatpush2.msra.mxu0 0.0
      %1285 = vmatprep.subr.mxu0 0.0
      %1286 = vmatpush2.msra.mxu0 0.0
      %1287 = vmatprep.mubr.f32.mxu0 0.0
      %1288 = vmatmul.mubr.f32.gmra.mxu0 %v644
      %v1289 = vpop.f32.mrf.mxu0
      %v1290 = vadd.f32 %v1185, %v1289
      %v1291 = vpop.f32.mrf.mxu0
      %1292 = vmatprep.mubr.f32.mxu0 0.0
      %1293 = vmatmul.mubr.f32.gmra.mxu0 %v645
      %v1294 = vpop.f32.mrf.mxu0
      %v1295 = vadd.f32 %v1190, %v1294
      %v1296 = vpop.f32.mrf.mxu0
      %1297 = vmatprep.mubr.f32.mxu0 0.0
      %1298 = vmatmul.mubr.f32.gmra.mxu0 %v646
      %v1299 = vpop.f32.mrf.mxu0
      %v1300 = vadd.f32 %v1195, %v1299
      %v1301 = vpop.f32.mrf.mxu0
      %1302 = vmatprep.mubr.f32.mxu0 0.0
      %1303 = vmatmul.mubr.f32.gmra.mxu0 %v647
      %v1304 = vpop.f32.mrf.mxu0
      %v1305 = vadd.f32 %v1200, %v1304
      %v1306 = vpop.f32.mrf.mxu0
      %1307 = vmatprep.mubr.f32.mxu0 0.0
      %1308 = vmatmul.mubr.f32.gmra.mxu0 %v648
      %v1309 = vpop.f32.mrf.mxu0
      %v1310 = vadd.f32 %v1205, %v1309
      %v1311 = vpop.f32.mrf.mxu0
      %1312 = vmatprep.mubr.f32.mxu0 0.0
      %1313 = vmatmul.mubr.f32.gmra.mxu0 %v649
      %v1314 = vpop.f32.mrf.mxu0
      %v1315 = vadd.f32 %v1210, %v1314
      %v1316 = vpop.f32.mrf.mxu0
      %1317 = vmatprep.mubr.f32.mxu0 0.0
      %1318 = vmatmul.mubr.f32.gmra.mxu0 %v650
      %v1319 = vpop.f32.mrf.mxu0
      %v1320 = vadd.f32 %v1215, %v1319
      %v1321 = vpop.f32.mrf.mxu0
      %1322 = vmatprep.mubr.f32.mxu0 0.0
      %1323 = vmatmul.mubr.f32.gmra.mxu0 %v651
      %v1324 = vpop.f32.mrf.mxu0
      %v1325 = vadd.f32 %v1220, %v1324
      %v1326 = vpop.f32.mrf.mxu0
      %1327 = vdwg.mxu0
      %1328 = vst [vmem:[%s578] sm:$0xff] %v1290
      %1329 = vst [vmem:[%s578 + $0x8] sm:$0xff] %v1295
      %1330 = vst [vmem:[%s578 + $0x10] sm:$0xff] %v1300
      %1331 = vst [vmem:[%s578 + $0x18] sm:$0xff] %v1305
      %1332 = vst [vmem:[%s578 + $0x20] sm:$0xff] %v1310
      %1333 = vst [vmem:[%s578 + $0x28] sm:$0xff] %v1315
      %1334 = vst [vmem:[%s578 + $0x30] sm:$0xff] %v1320
      %1335 = vst [vmem:[%s578 + $0x38] sm:$0xff] %v1325
      %s1336 = smul.u32 8, %s26
      %p1337 = scmp.lt.s32.totalorder %s25, 1
      %s1338 = scalar_select %p1337, %s25, 1
      %p1339 = scmp.lt.s32.totalorder %s1336, 7
      %s1340 = scalar_select %p1339, %s1336, 7
      %p1341 = scmp.lt.s32.totalorder %s24, 0
      %s1342 = scalar_select %p1341, %s24, 0
      %s1343 = sadd.s32 %s1342, %s1340
      %s1344 = smul.addr %s1338, 8
      %s1345 = sadd.s32 %s1343, %s1344
      %s1346 = smul.addr %s1345, 8
      %s1347 = scalar_lea.vmem %s8, %s1346
      // Predicated region
      $region53: #{downsample_conv2d.1} parent=51 // pred_check
        %p1348 = pneg %p280
      $region54: #{downsample_conv2d.1} parent=51 // pred_check_branch
        %1350 = sbr.rel (%p1348) target = $region56
      $region55: #{downsample_conv2d.1} parent=51 // pred_region
        %s1351 = smul.u32 8, %s26
      $region56: #{downsample_conv2d.1} parent=51 // pred_fallthru
        _
    $region52: #{downsample_conv2d.1} parent=5 // pred_fallthru
      _
    %p1352 = scmp.le.s32.totalorder 2, %s14
    // Predicated region
    $region57: #{downsample_conv2d.1} parent=5 // pred_check
      %p1353 = pneg %p1352
    $region58: #{downsample_conv2d.1} parent=5 // pred_check_branch
      %1355 = sbr.rel (%p1353) target = $region60
    $region59: #{downsample_conv2d.1} parent=5 // pred_region
      %s1356 = ssub.s32 %s14, 2
      // Predicated region
      $region61: #{downsample_conv2d.1} parent=59 // pred_check
        %p1357 = pneg %p286
      $region62: #{downsample_conv2d.1} parent=59 // pred_check_branch
        %1359 = sbr.rel (%p1357) target = $region64
      $region63: #{downsample_conv2d.1} parent=59 // pred_region
        %s1360 = smul.u32 8, %s29
        %p1361 = scmp.lt.s32.totalorder %s28, 1
        %s1362 = scalar_select %p1361, %s28, 1
        %p1363 = scmp.lt.s32.totalorder %s1360, 7
        %s1364 = scalar_select %p1363, %s1360, 7
        %p1365 = scmp.lt.s32.totalorder %s27, 0
        %s1366 = scalar_select %p1365, %s27, 0
        %s1367 = sadd.s32 %s1366, %s1364
        %s1368 = smul.addr %s1362, 8
        %s1369 = sadd.s32 %s1367, %s1368
        %s1370 = smul.addr %s1369, 8
        %s1371 = scalar_lea.vmem %s8, %s1370
      $region64: #{downsample_conv2d.1} parent=59 // pred_fallthru
        _
    $region60: #{downsample_conv2d.1} parent=5 // pred_fallthru
      _
  $region6: #{downsample_conv2d.1} parent=0 // loop_footer
    %s18 = sadd.s32 1, %s14
  $region7: #{downsample_conv2d.1} parent=0 // loop_footer_branch
    %13 = sbr.rel target = $region3
  $region8: #{downsample_conv2d.1} parent=0 // loop_exit
    _

</llo_original>
